<compile_context>
chip_gen: v6e
topology: v6e:2x2x1
jax: 0.10.0
libtpu: 0.0.40
codegen_flags: <defaults>
</compile_context>

<pallas_src>
import jax
import jax.numpy as jnp
from jax.experimental import pallas as pl
from jax.experimental.pallas import tpu as pltpu


UNK_IDX = 0
PAD_IDX = 1


# ---------------------------------------------------------------------------
# Pallas kernel: one bidirectional LSTM layer, chunked over time via the grid.
# ---------------------------------------------------------------------------
def _bilstm_chunk_kernel(len_ref, xgf_ref, xgb_ref, whhf_ref, whhb_ref,
                         outf_ref, outb_ref, hnf_ref, hnb_ref,
                         hf_sc, cf_sc, hb_sc, cb_sc):
    """Grid axis 0 walks time-chunks.  Forward direction consumes chunk i,
    backward direction consumes chunk (nc-1-i); h/c carries live in VMEM scratch.

    len_ref  : (B, 1)      int32   sequence lengths
    xg{f,b}  : (tc, B, 4H) f32     precomputed x @ W_ih + b for each direction
    whh{f,b} : (H, 4H)     bf16    recurrent weights
    out{f,b} : (tc, B, H)  f32     per-step hidden states (next layer's input halves)
    hn{f,b}  : (B, H)      f32     final hidden state per direction
    """
    tc, B, _ = xgf_ref.shape
    H = whhf_ref.shape[0]
    i = pl.program_id(0)
    nc = pl.num_programs(0)

    @pl.when(i == 0)
    def _init():
        z = jnp.zeros((B, H), jnp.float32)
        hf_sc[...] = z
        cf_sc[...] = z
        hb_sc[...] = z
        cb_sc[...] = z

    len_v = len_ref[...]            # (B, 1) int32
    whh_f = whhf_ref[...]           # (H, 4H) bf16
    whh_b = whhb_ref[...]
    t0_f = i * tc                   # absolute time base of the forward chunk
    t0_b = (nc - 1 - i) * tc        # absolute time base of the backward chunk

    def cell(xg, h, c, whh):
        # gates = (x @ W_ih + b) + h @ W_hh ; only the recurrent matmul is in-loop.
        g = xg + jnp.dot(h.astype(jnp.bfloat16), whh,
                         preferred_element_type=jnp.float32)
        i_g = jax.nn.sigmoid(g[:, 0 * H:1 * H])
        f_g = jax.nn.sigmoid(g[:, 1 * H:2 * H])
        g_g = jnp.tanh(g[:, 2 * H:3 * H])
        o_g = jax.nn.sigmoid(g[:, 3 * H:4 * H])
        c_new = f_g * c + i_g * g_g
        h_new = o_g * jnp.tanh(c_new)
        return h_new, c_new

    def step(t_loc, carry):
        h_f, c_f, h_b, c_b = carry

        # ---- forward direction: local time t_loc (absolute t0_f + t_loc) ----
        hf_new, cf_new = cell(xgf_ref[t_loc], h_f, c_f, whh_f)
        m_f = (t0_f + t_loc) < len_v                     # (B, 1) bool
        h_f = jnp.where(m_f, hf_new, h_f)
        c_f = jnp.where(m_f, cf_new, c_f)
        outf_ref[t_loc] = h_f

        # ---- backward direction: local time tc-1-t_loc (descending) ----
        tl_b = tc - 1 - t_loc
        hb_new, cb_new = cell(xgb_ref[tl_b], h_b, c_b, whh_b)
        m_b = (t0_b + tl_b) < len_v
        h_b = jnp.where(m_b, hb_new, h_b)
        c_b = jnp.where(m_b, cb_new, c_b)
        outb_ref[tl_b] = h_b

        return h_f, c_f, h_b, c_b

    carry = (hf_sc[...], cf_sc[...], hb_sc[...], cb_sc[...])

    # manual 2x unroll of the recurrent loop
    def two_steps(j, carry):
        carry = step(2 * j, carry)
        carry = step(2 * j + 1, carry)
        return carry

    carry = jax.lax.fori_loop(0, tc // 2, two_steps, carry)
    if tc % 2:                                            # static tail
        carry = step(tc - 1, carry)

    h_f, c_f, h_b, c_b = carry
    hf_sc[...] = h_f
    cf_sc[...] = c_f
    hb_sc[...] = h_b
    cb_sc[...] = c_b
    # final hidden states: the last write (grid step nc-1) is what lands in HBM
    hnf_ref[...] = h_f
    hnb_ref[...] = h_b


# ---------------------------------------------------------------------------
# Wrappers
# ---------------------------------------------------------------------------
def _round_up(x, m):
    return ((x + m - 1) // m) * m


def _project(x_parts, w_ih, b):
    """x @ W_ih + b without materializing concat(x_parts): bf16 MXU, f32 accumulate."""
    acc = None
    off = 0
    for part in x_parts:
        d = part.shape[-1]
        contrib = jnp.einsum('tbd,dg->tbg',
                             part.astype(jnp.bfloat16),
                             w_ih[off:off + d].astype(jnp.bfloat16),
                             preferred_element_type=jnp.float32)
        acc = contrib if acc is None else acc + contrib
        off += d
    return acc + b


def run_bilstm_layer(x_parts, len_col, layer, tc):
    """One bidirectional LSTM layer.  x_parts: list of (T_pad, B_pad, d_i) f32."""
    T_pad, B_pad = x_parts[0].shape[:2]
    w_ih_f, w_hh_f, b_f = layer['fwd']
    w_ih_b, w_hh_b, b_b = layer['bwd']
    H = w_hh_f.shape[0]
    nc = T_pad // tc

    # input projection hoisted out of the recurrence (one batched matmul per dir)
    xg_f = _project(x_parts, w_ih_f, b_f)        # (T_pad, B_pad, 4H) f32
    xg_b = _project(x_parts, w_ih_b, b_b)

    grid_spec = pltpu.PrefetchScalarGridSpec(
        num_scalar_prefetch=0,
        grid=(nc,),
        in_specs=[
            pl.BlockSpec((B_pad, 1), lambda i: (0, 0)),                  # lengths
            pl.BlockSpec((tc, B_pad, 4 * H), lambda i: (i, 0, 0)),       # xg fwd chunk
            pl.BlockSpec((tc, B_pad, 4 * H), lambda i: (nc - 1 - i, 0, 0)),  # xg bwd
            pl.BlockSpec((H, 4 * H), lambda i: (0, 0)),                  # W_hh fwd
            pl.BlockSpec((H, 4 * H), lambda i: (0, 0)),                  # W_hh bwd
        ],
        out_specs=(
            pl.BlockSpec((tc, B_pad, H), lambda i: (i, 0, 0)),           # out fwd
            pl.BlockSpec((tc, B_pad, H), lambda i: (nc - 1 - i, 0, 0)),  # out bwd
            pl.BlockSpec((B_pad, H), lambda i: (0, 0)),                  # h_n fwd
            pl.BlockSpec((B_pad, H), lambda i: (0, 0)),                  # h_n bwd
        ),
        scratch_shapes=[pltpu.VMEM((B_pad, H), jnp.float32)] * 4,        # h/c carries
    )

    out_f, out_b, hn_f, hn_b = pl.pallas_call(
        _bilstm_chunk_kernel,
        grid_spec=grid_spec,
        out_shape=(
            jax.ShapeDtypeStruct((T_pad, B_pad, H), jnp.float32),
            jax.ShapeDtypeStruct((T_pad, B_pad, H), jnp.float32),
            jax.ShapeDtypeStruct((B_pad, H), jnp.float32),
            jax.ShapeDtypeStruct((B_pad, H), jnp.float32),
        ),
        compiler_params=pltpu.CompilerParams(
            dimension_semantics=("arbitrary",)),
    )(len_col, xg_f, xg_b,
      w_hh_f.astype(jnp.bfloat16), w_hh_b.astype(jnp.bfloat16))
    return out_f, out_b, hn_f, hn_b


# ---------------------------------------------------------------------------
# Model (parameter setup + glue in plain JAX)
# ---------------------------------------------------------------------------
def init_params(key, vocab_size, emb_dim, hidden_dim, n_layers, output_dim):
    keys = iter(jax.random.split(key, 8 + 8 * n_layers))
    p = {}
    emb = jax.random.normal(next(keys), (vocab_size, emb_dim), jnp.float32)
    emb = emb.at[UNK_IDX].set(0.0).at[PAD_IDX].set(0.0)
    p['embedding'] = emb

    k = 1.0 / float(hidden_dim) ** 0.5
    layers = []
    for l in range(n_layers):
        in_dim = emb_dim if l == 0 else 2 * hidden_dim
        layer = {}
        for d in ('fwd', 'bwd'):
            w_ih = jax.random.uniform(next(keys), (in_dim, 4 * hidden_dim),
                                      minval=-k, maxval=k, dtype=jnp.float32)
            w_hh = jax.random.uniform(next(keys), (hidden_dim, 4 * hidden_dim),
                                      minval=-k, maxval=k, dtype=jnp.float32)
            b_ih = jax.random.uniform(next(keys), (1, 4 * hidden_dim),
                                      minval=-k, maxval=k, dtype=jnp.float32)
            b_hh = jax.random.uniform(next(keys), (1, 4 * hidden_dim),
                                      minval=-k, maxval=k, dtype=jnp.float32)
            layer[d] = (w_ih, w_hh, b_ih + b_hh)
        layers.append(layer)
    p['lstm'] = layers

    kl = 1.0 / float(2 * hidden_dim) ** 0.5
    p['lin_w'] = jax.random.uniform(next(keys), (2 * hidden_dim, output_dim),
                                    minval=-kl, maxval=kl, dtype=jnp.float32)
    p['lin_b'] = jax.random.uniform(next(keys), (1, output_dim),
                                    minval=-kl, maxval=kl, dtype=jnp.float32)
    return p


def vlstm_forward(params, text, lengths, *, time_chunk=8):
    """Equivalent of VLSTM.forward(text, text_lengths) in eval() mode."""
    T, B = text.shape
    tc = time_chunk
    T_pad = _round_up(T, tc)
    B_pad = _round_up(B, 8)

    # padded rows/steps are neutralized by length masking (padded lengths = 0)
    text_p = jnp.pad(text, ((0, T_pad - T), (0, B_pad - B)),
                     constant_values=PAD_IDX)
    len_p = jnp.pad(lengths.astype(jnp.int32), (0, B_pad - B))
    len_col = len_p[:, None]                                  # (B_pad, 1) int32

    embedded = params['embedding'][text_p]                    # (T_pad,B_pad,E); dropout=id

    x_parts = [embedded]
    hn_f = hn_b = None
    for layer in params['lstm']:
        out_f, out_b, hn_f, hn_b = run_bilstm_layer(x_parts, len_col, layer, tc)
        x_parts = [out_f, out_b]          # no concat: next layer projects each half

    hidden = jnp.concatenate([hn_f, hn_b], axis=-1)[:B]       # cat(hidden[-2], hidden[-1])
    return hidden @ params['lin_w'] + params['lin_b']         # (B, output_dim)


# ---------------------------------------------------------------------------
# Pure-JAX reference (same bf16-matmul / masked-LSTM math, no Pallas)
# ---------------------------------------------------------------------------
def _ref_bilstm_layer(x, lengths, layer):
    T, B, _ = x.shape
    H = layer['fwd'][1].shape[0]

    def run_dir(w_ih, w_hh, b, reverse):
        xg = jnp.einsum('tbd,dg->tbg', x.astype(jnp.bfloat16),
                        w_ih.astype(jnp.bfloat16),
                        preferred_element_type=jnp.float32) + b
        whh = w_hh.astype(jnp.bfloat16)
        h = jnp.zeros((B, H), jnp.float32)
        c = jnp.zeros((B, H), jnp.float32)
        outs = [None] * T
        order = range(T - 1, -1, -1) if reverse else range(T)
        for t in order:
            g = xg[t] + jnp.dot(h.astype(jnp.bfloat16), whh,
                                preferred_element_type=jnp.float32)
            i_g = jax.nn.sigmoid(g[:, 0 * H:1 * H])
            f_g = jax.nn.sigmoid(g[:, 1 * H:2 * H])
            g_g = jnp.tanh(g[:, 2 * H:3 * H])
            o_g = jax.nn.sigmoid(g[:, 3 * H:4 * H])
            c_new = f_g * c + i_g * g_g
            h_new = o_g * jnp.tanh(c_new)
            m = (t < lengths)[:, None]
            h = jnp.where(m, h_new, h)
            c = jnp.where(m, c_new, c)
            outs[t] = h
        return jnp.stack(outs, axis=0), h

    out_f, hn_f = run_dir(*layer['fwd'], False)
    out_b, hn_b = run_dir(*layer['bwd'], True)
    return jnp.concatenate([out_f, out_b], axis=-1), hn_f, hn_b


def vlstm_forward_ref(params, text, lengths):
    x = params['embedding'][text]
    hn_f = hn_b = None
    for layer in params['lstm']:
        x, hn_f, hn_b = _ref_bilstm_layer(x, lengths, layer)
    hidden = jnp.concatenate([hn_f, hn_b], axis=-1)
    return hidden @ params['lin_w'] + params['lin_b']


# ---------------------------------------------------------------------------
if __name__ == "__main__":
    # small shapes consistent with the module's forward
    VOCAB, EMB, HID, NLAYERS, OUT = 50, 32, 32, 2, 1
    T, B = 12, 4

    key = jax.random.PRNGKey(0)
    k_par, k_txt = jax.random.split(key)
    params = init_params(k_par, VOCAB, EMB, HID, NLAYERS, OUT)

    lengths = jnp.array([12, 10, 7, 5], dtype=jnp.int32)       # sorted, like pack_padded
    text = jax.random.randint(k_txt, (T, B), 2, VOCAB, dtype=jnp.int32)
    pad_mask = jnp.arange(T)[:, None] >= lengths[None, :]
    text = jnp.where(pad_mask, PAD_IDX, text)

    logits = jax.jit(vlstm_forward)(params, text, lengths)
    logits = jax.block_until_ready(logits)

    ref = vlstm_forward_ref(params, text, lengths)
    assert logits.shape == (B, OUT)
    err = jnp.max(jnp.abs(logits - ref))
    assert err < 2e-3, f"Pallas output mismatch vs reference (max abs err {err})"

    print("KERNEL_OK")
</pallas_src>

<mosaic_0001>
module attributes {stable_mosaic.version = 11 : i64} {
  func.func @_bilstm_chunk_kernel(%arg0: i32, %arg1: memref<8x1xi32, #tpu.memory_space<vmem>>, %arg2: memref<8x8x128xf32, #tpu.memory_space<vmem>>, %arg3: memref<8x8x128xf32, #tpu.memory_space<vmem>>, %arg4: memref<32x128xbf16, #tpu.memory_space<vmem>>, %arg5: memref<32x128xbf16, #tpu.memory_space<vmem>>, %arg6: memref<8x8x32xf32, #tpu.memory_space<vmem>>, %arg7: memref<8x8x32xf32, #tpu.memory_space<vmem>>, %arg8: memref<8x32xf32, #tpu.memory_space<vmem>>, %arg9: memref<8x32xf32, #tpu.memory_space<vmem>>, %arg10: memref<8x32xf32, #tpu.memory_space<vmem>>, %arg11: memref<8x32xf32, #tpu.memory_space<vmem>>, %arg12: memref<8x32xf32, #tpu.memory_space<vmem>>, %arg13: memref<8x32xf32, #tpu.memory_space<vmem>>) attributes {dimension_semantics = [#tpu.dimension_semantics<arbitrary>], iteration_bounds = array<i64: 2>, scalar_prefetch = 0 : i64, scratch_operands = 4 : i64, tpu.core_type = #tpu.core_type<tc>, window_params = [{pipeline_mode = #tpu.pipeline_mode<synchronous>, transform_indices = @transform_0, window_bounds = array<i64: 8, 1>}, {transform_indices = @transform_1, window_bounds = array<i64: 8, 8, 128>}, {transform_indices = @transform_2, window_bounds = array<i64: 8, 8, 128>}, {pipeline_mode = #tpu.pipeline_mode<synchronous>, transform_indices = @transform_3, window_bounds = array<i64: 32, 128>}, {pipeline_mode = #tpu.pipeline_mode<synchronous>, transform_indices = @transform_4, window_bounds = array<i64: 32, 128>}, {transform_indices = @transform_5, window_bounds = array<i64: 8, 8, 32>}, {transform_indices = @transform_6, window_bounds = array<i64: 8, 8, 32>}, {pipeline_mode = #tpu.pipeline_mode<synchronous>, transform_indices = @transform_7, window_bounds = array<i64: 8, 32>}, {pipeline_mode = #tpu.pipeline_mode<synchronous>, transform_indices = @transform_8, window_bounds = array<i64: 8, 32>}]} {
    %c0_i32 = arith.constant 0 : i32
    %0 = arith.cmpi eq, %arg0, %c0_i32 : i32
    %1 = arith.extui %0 : i1 to i32
    %c0_i32_0 = arith.constant 0 : i32
    %2 = arith.cmpi ne, %1, %c0_i32_0 : i32
    scf.if %2 {
      %cst = arith.constant 0.000000e+00 : f32
      %21 = vector.broadcast %cst : f32 to vector<8x32xf32>
      %c0_30 = arith.constant 0 : index
      %c0_31 = arith.constant 0 : index
      %22 = vector.load %arg10[%c0_30, %c0_31] : memref<8x32xf32, #tpu.memory_space<vmem>>, vector<8x32xf32>
      tpu.vector_store %arg10[%c0_30, %c0_31], %21 {strides = array<i32>} : memref<8x32xf32, #tpu.memory_space<vmem>>, vector<8x32xf32>,
      %c0_32 = arith.constant 0 : index
      %c0_33 = arith.constant 0 : index
      %23 = vector.load %arg11[%c0_32, %c0_33] : memref<8x32xf32, #tpu.memory_space<vmem>>, vector<8x32xf32>
      tpu.vector_store %arg11[%c0_32, %c0_33], %21 {strides = array<i32>} : memref<8x32xf32, #tpu.memory_space<vmem>>, vector<8x32xf32>,
      %c0_34 = arith.constant 0 : index
      %c0_35 = arith.constant 0 : index
      %24 = vector.load %arg12[%c0_34, %c0_35] : memref<8x32xf32, #tpu.memory_space<vmem>>, vector<8x32xf32>
      tpu.vector_store %arg12[%c0_34, %c0_35], %21 {strides = array<i32>} : memref<8x32xf32, #tpu.memory_space<vmem>>, vector<8x32xf32>,
      %c0_36 = arith.constant 0 : index
      %c0_37 = arith.constant 0 : index
      %25 = vector.load %arg13[%c0_36, %c0_37] : memref<8x32xf32, #tpu.memory_space<vmem>>, vector<8x32xf32>
      tpu.vector_store %arg13[%c0_36, %c0_37], %21 {strides = array<i32>} : memref<8x32xf32, #tpu.memory_space<vmem>>, vector<8x32xf32>,
    } else {
    }
    %c0 = arith.constant 0 : index
    %c0_1 = arith.constant 0 : index
    %3 = vector.load %arg1[%c0, %c0_1] : memref<8x1xi32, #tpu.memory_space<vmem>>, vector<8x1xi32>
    %c0_2 = arith.constant 0 : index
    %c0_3 = arith.constant 0 : index
    %4 = vector.load %arg4[%c0_2, %c0_3] : memref<32x128xbf16, #tpu.memory_space<vmem>>, vector<32x128xbf16>
    %c0_4 = arith.constant 0 : index
    %c0_5 = arith.constant 0 : index
    %5 = vector.load %arg5[%c0_4, %c0_5] : memref<32x128xbf16, #tpu.memory_space<vmem>>, vector<32x128xbf16>
    %c8_i32 = arith.constant 8 : i32
    %6 = arith.muli %arg0, %c8_i32 : i32
    %c1_i32 = arith.constant 1 : i32
    %7 = arith.subi %c1_i32, %arg0 : i32
    %c8_i32_6 = arith.constant 8 : i32
    %8 = arith.muli %7, %c8_i32_6 : i32
    %c0_7 = arith.constant 0 : index
    %c0_8 = arith.constant 0 : index
    %9 = vector.load %arg10[%c0_7, %c0_8] : memref<8x32xf32, #tpu.memory_space<vmem>>, vector<8x32xf32>
    %c0_9 = arith.constant 0 : index
    %c0_10 = arith.constant 0 : index
    %10 = vector.load %arg11[%c0_9, %c0_10] : memref<8x32xf32, #tpu.memory_space<vmem>>, vector<8x32xf32>
    %c0_11 = arith.constant 0 : index
    %c0_12 = arith.constant 0 : index
    %11 = vector.load %arg12[%c0_11, %c0_12] : memref<8x32xf32, #tpu.memory_space<vmem>>, vector<8x32xf32>
    %c0_13 = arith.constant 0 : index
    %c0_14 = arith.constant 0 : index
    %12 = vector.load %arg13[%c0_13, %c0_14] : memref<8x32xf32, #tpu.memory_space<vmem>>, vector<8x32xf32>
    %c0_i32_15 = arith.constant 0 : i32
    %c4_i32 = arith.constant 4 : i32
    %13 = arith.addi %c0_i32_15, %c4_i32 : i32
    %c1_i32_16 = arith.constant 1 : i32
    %14:4 = scf.for %arg14 = %c0_i32_15 to %13 step %c1_i32_16 iter_args(%arg15 = %9, %arg16 = %10, %arg17 = %11, %arg18 = %12) -> (vector<8x32xf32>, vector<8x32xf32>, vector<8x32xf32>, vector<8x32xf32>)  : i32 {
      %c2_i32 = arith.constant 2 : i32
      %21 = arith.muli %c2_i32, %arg14 : i32
      %22 = arith.index_cast %21 : i32 to index
      %c0_30 = arith.constant 0 : index
      %c0_31 = arith.constant 0 : index
      %23 = vector.load %arg2[%22, %c0_30, %c0_31] : memref<8x8x128xf32, #tpu.memory_space<vmem>>, vector<1x8x128xf32>
      %24 = vector.shape_cast %23 : vector<1x8x128xf32> to vector<8x128xf32>
      %25 = arith.truncf %arg15 : vector<8x32xf32> to vector<8x32xbf16>
      %cst = arith.constant dense<0.000000e+00> : vector<8x128xf32>
      %26 = tpu.matmul %25, %4, %cst {dimension_numbers = #tpu.dot_dimension_numbers<[1], [0], [0], [1], [0, 0, 1, 1], [], []>} : vector<8x32xbf16>, vector<32x128xbf16>, vector<8x128xf32> -> vector<8x128xf32>
      %27 = arith.addf %24, %26 : vector<8x128xf32>
      %28 = vector.extract_strided_slice %27 {offsets = [0, 0], sizes = [8, 32], strides = [1, 1]} : vector<8x128xf32> to vector<8x32xf32>
      %29 = arith.negf %28 : vector<8x32xf32>
      %30 = math.exp %29 : vector<8x32xf32>
      %cst_32 = arith.constant 1.000000e+00 : f32
      %31 = vector.broadcast %cst_32 : f32 to vector<8x32xf32>
      %32 = arith.addf %31, %30 : vector<8x32xf32>
      %33 = arith.divf %31, %32 : vector<8x32xf32>
      %34 = vector.extract_strided_slice %27 {offsets = [0, 32], sizes = [8, 32], strides = [1, 1]} : vector<8x128xf32> to vector<8x32xf32>
      %35 = arith.negf %34 : vector<8x32xf32>
      %36 = math.exp %35 : vector<8x32xf32>
      %cst_33 = arith.constant 1.000000e+00 : f32
      %37 = vector.broadcast %cst_33 : f32 to vector<8x32xf32>
      %38 = arith.addf %37, %36 : vector<8x32xf32>
      %39 = arith.divf %37, %38 : vector<8x32xf32>
      %40 = vector.extract_strided_slice %27 {offsets = [0, 64], sizes = [8, 32], strides = [1, 1]} : vector<8x128xf32> to vector<8x32xf32>
      %41 = math.tanh %40 : vector<8x32xf32>
      %42 = vector.extract_strided_slice %27 {offsets = [0, 96], sizes = [8, 32], strides = [1, 1]} : vector<8x128xf32> to vector<8x32xf32>
      %43 = arith.negf %42 : vector<8x32xf32>
      %44 = math.exp %43 : vector<8x32xf32>
      %cst_34 = arith.constant 1.000000e+00 : f32
      %45 = vector.broadcast %cst_34 : f32 to vector<8x32xf32>
      %46 = arith.addf %45, %44 : vector<8x32xf32>
      %47 = arith.divf %45, %46 : vector<8x32xf32>
      %48 = arith.mulf %39, %arg16 : vector<8x32xf32>
      %49 = arith.mulf %33, %41 : vector<8x32xf32>
      %50 = arith.addf %48, %49 : vector<8x32xf32>
      %51 = math.tanh %50 : vector<8x32xf32>
      %52 = arith.mulf %47, %51 : vector<8x32xf32>
      %53 = arith.addi %6, %21 : i32
      %54 = vector.broadcast %53 : i32 to vector<8x1xi32>
      %55 = arith.cmpi slt, %54, %3 : vector<8x1xi32>
      %56 = vector.shape_cast %55 : vector<8x1xi1> to vector<8x1xi1>
      %57 = vector.broadcast %56 : vector<8x1xi1> to vector<8x32xi1>
      %58 = arith.select %57, %52, %arg15 : vector<8x32xi1>, vector<8x32xf32>
      %59 = vector.shape_cast %55 : vector<8x1xi1> to vector<8x1xi1>
      %60 = vector.broadcast %59 : vector<8x1xi1> to vector<8x32xi1>
      %61 = arith.select %60, %50, %arg16 : vector<8x32xi1>, vector<8x32xf32>
      %62 = arith.index_cast %21 : i32 to index
      %c0_35 = arith.constant 0 : index
      %c0_36 = arith.constant 0 : index
      %63 = vector.load %arg6[%62, %c0_35, %c0_36] : memref<8x8x32xf32, #tpu.memory_space<vmem>>, vector<1x8x32xf32>
      %64 = vector.shape_cast %63 : vector<1x8x32xf32> to vector<8x32xf32>
      %65 = vector.shape_cast %58 : vector<8x32xf32> to vector<1x8x32xf32>
      tpu.vector_store %arg6[%62, %c0_35, %c0_36], %65 {strides = array<i32>} : memref<8x8x32xf32, #tpu.memory_space<vmem>>, vector<1x8x32xf32>,
      %c7_i32 = arith.constant 7 : i32
      %66 = arith.subi %c7_i32, %21 : i32
      %67 = arith.index_cast %66 : i32 to index
      %c0_37 = arith.constant 0 : index
      %c0_38 = arith.constant 0 : index
      %68 = vector.load %arg3[%67, %c0_37, %c0_38] : memref<8x8x128xf32, #tpu.memory_space<vmem>>, vector<1x8x128xf32>
      %69 = vector.shape_cast %68 : vector<1x8x128xf32> to vector<8x128xf32>
      %70 = arith.truncf %arg17 : vector<8x32xf32> to vector<8x32xbf16>
      %cst_39 = arith.constant dense<0.000000e+00> : vector<8x128xf32>
      %71 = tpu.matmul %70, %5, %cst_39 {dimension_numbers = #tpu.dot_dimension_numbers<[1], [0], [0], [1], [0, 0, 1, 1], [], []>} : vector<8x32xbf16>, vector<32x128xbf16>, vector<8x128xf32> -> vector<8x128xf32>
      %72 = arith.addf %69, %71 : vector<8x128xf32>
      %73 = vector.extract_strided_slice %72 {offsets = [0, 0], sizes = [8, 32], strides = [1, 1]} : vector<8x128xf32> to vector<8x32xf32>
      %74 = arith.negf %73 : vector<8x32xf32>
      %75 = math.exp %74 : vector<8x32xf32>
      %cst_40 = arith.constant 1.000000e+00 : f32
      %76 = vector.broadcast %cst_40 : f32 to vector<8x32xf32>
      %77 = arith.addf %76, %75 : vector<8x32xf32>
      %78 = arith.divf %76, %77 : vector<8x32xf32>
      %79 = vector.extract_strided_slice %72 {offsets = [0, 32], sizes = [8, 32], strides = [1, 1]} : vector<8x128xf32> to vector<8x32xf32>
      %80 = arith.negf %79 : vector<8x32xf32>
      %81 = math.exp %80 : vector<8x32xf32>
      %cst_41 = arith.constant 1.000000e+00 : f32
      %82 = vector.broadcast %cst_41 : f32 to vector<8x32xf32>
      %83 = arith.addf %82, %81 : vector<8x32xf32>
      %84 = arith.divf %82, %83 : vector<8x32xf32>
      %85 = vector.extract_strided_slice %72 {offsets = [0, 64], sizes = [8, 32], strides = [1, 1]} : vector<8x128xf32> to vector<8x32xf32>
      %86 = math.tanh %85 : vector<8x32xf32>
      %87 = vector.extract_strided_slice %72 {offsets = [0, 96], sizes = [8, 32], strides = [1, 1]} : vector<8x128xf32> to vector<8x32xf32>
      %88 = arith.negf %87 : vector<8x32xf32>
      %89 = math.exp %88 : vector<8x32xf32>
      %cst_42 = arith.constant 1.000000e+00 : f32
      %90 = vector.broadcast %cst_42 : f32 to vector<8x32xf32>
      %91 = arith.addf %90, %89 : vector<8x32xf32>
      %92 = arith.divf %90, %91 : vector<8x32xf32>
      %93 = arith.mulf %84, %arg18 : vector<8x32xf32>
      %94 = arith.mulf %78, %86 : vector<8x32xf32>
      %95 = arith.addf %93, %94 : vector<8x32xf32>
      %96 = math.tanh %95 : vector<8x32xf32>
      %97 = arith.mulf %92, %96 : vector<8x32xf32>
      %98 = arith.addi %8, %66 : i32
      %99 = vector.broadcast %98 : i32 to vector<8x1xi32>
      %100 = arith.cmpi slt, %99, %3 : vector<8x1xi32>
      %101 = vector.shape_cast %100 : vector<8x1xi1> to vector<8x1xi1>
      %102 = vector.broadcast %101 : vector<8x1xi1> to vector<8x32xi1>
      %103 = arith.select %102, %97, %arg17 : vector<8x32xi1>, vector<8x32xf32>
      %104 = vector.shape_cast %100 : vector<8x1xi1> to vector<8x1xi1>
      %105 = vector.broadcast %104 : vector<8x1xi1> to vector<8x32xi1>
      %106 = arith.select %105, %95, %arg18 : vector<8x32xi1>, vector<8x32xf32>
      %107 = arith.index_cast %66 : i32 to index
      %c0_43 = arith.constant 0 : index
      %c0_44 = arith.constant 0 : index
      %108 = vector.load %arg7[%107, %c0_43, %c0_44] : memref<8x8x32xf32, #tpu.memory_space<vmem>>, vector<1x8x32xf32>
      %109 = vector.shape_cast %108 : vector<1x8x32xf32> to vector<8x32xf32>
      %110 = vector.shape_cast %103 : vector<8x32xf32> to vector<1x8x32xf32>
      tpu.vector_store %arg7[%107, %c0_43, %c0_44], %110 {strides = array<i32>} : memref<8x8x32xf32, #tpu.memory_space<vmem>>, vector<1x8x32xf32>,
      %c2_i32_45 = arith.constant 2 : i32
      %111 = arith.muli %c2_i32_45, %arg14 : i32
      %c1_i32_46 = arith.constant 1 : i32
      %112 = arith.addi %111, %c1_i32_46 : i32
      %113 = arith.index_cast %112 : i32 to index
      %c0_47 = arith.constant 0 : index
      %c0_48 = arith.constant 0 : index
      %114 = vector.load %arg2[%113, %c0_47, %c0_48] : memref<8x8x128xf32, #tpu.memory_space<vmem>>, vector<1x8x128xf32>
      %115 = vector.shape_cast %114 : vector<1x8x128xf32> to vector<8x128xf32>
      %116 = arith.truncf %58 : vector<8x32xf32> to vector<8x32xbf16>
      %cst_49 = arith.constant dense<0.000000e+00> : vector<8x128xf32>
      %117 = tpu.matmul %116, %4, %cst_49 {dimension_numbers = #tpu.dot_dimension_numbers<[1], [0], [0], [1], [0, 0, 1, 1], [], []>} : vector<8x32xbf16>, vector<32x128xbf16>, vector<8x128xf32> -> vector<8x128xf32>
      %118 = arith.addf %115, %117 : vector<8x128xf32>
      %119 = vector.extract_strided_slice %118 {offsets = [0, 0], sizes = [8, 32], strides = [1, 1]} : vector<8x128xf32> to vector<8x32xf32>
      %120 = arith.negf %119 : vector<8x32xf32>
      %121 = math.exp %120 : vector<8x32xf32>
      %cst_50 = arith.constant 1.000000e+00 : f32
      %122 = vector.broadcast %cst_50 : f32 to vector<8x32xf32>
      %123 = arith.addf %122, %121 : vector<8x32xf32>
      %124 = arith.divf %122, %123 : vector<8x32xf32>
      %125 = vector.extract_strided_slice %118 {offsets = [0, 32], sizes = [8, 32], strides = [1, 1]} : vector<8x128xf32> to vector<8x32xf32>
      %126 = arith.negf %125 : vector<8x32xf32>
      %127 = math.exp %126 : vector<8x32xf32>
      %cst_51 = arith.constant 1.000000e+00 : f32
      %128 = vector.broadcast %cst_51 : f32 to vector<8x32xf32>
      %129 = arith.addf %128, %127 : vector<8x32xf32>
      %130 = arith.divf %128, %129 : vector<8x32xf32>
      %131 = vector.extract_strided_slice %118 {offsets = [0, 64], sizes = [8, 32], strides = [1, 1]} : vector<8x128xf32> to vector<8x32xf32>
      %132 = math.tanh %131 : vector<8x32xf32>
      %133 = vector.extract_strided_slice %118 {offsets = [0, 96], sizes = [8, 32], strides = [1, 1]} : vector<8x128xf32> to vector<8x32xf32>
      %134 = arith.negf %133 : vector<8x32xf32>
      %135 = math.exp %134 : vector<8x32xf32>
      %cst_52 = arith.constant 1.000000e+00 : f32
      %136 = vector.broadcast %cst_52 : f32 to vector<8x32xf32>
      %137 = arith.addf %136, %135 : vector<8x32xf32>
      %138 = arith.divf %136, %137 : vector<8x32xf32>
      %139 = arith.mulf %130, %61 : vector<8x32xf32>
      %140 = arith.mulf %124, %132 : vector<8x32xf32>
      %141 = arith.addf %139, %140 : vector<8x32xf32>
      %142 = math.tanh %141 : vector<8x32xf32>
      %143 = arith.mulf %138, %142 : vector<8x32xf32>
      %144 = arith.addi %6, %112 : i32
      %145 = vector.broadcast %144 : i32 to vector<8x1xi32>
      %146 = arith.cmpi slt, %145, %3 : vector<8x1xi32>
      %147 = vector.shape_cast %146 : vector<8x1xi1> to vector<8x1xi1>
      %148 = vector.broadcast %147 : vector<8x1xi1> to vector<8x32xi1>
      %149 = arith.select %148, %143, %58 : vector<8x32xi1>, vector<8x32xf32>
      %150 = vector.shape_cast %146 : vector<8x1xi1> to vector<8x1xi1>
      %151 = vector.broadcast %150 : vector<8x1xi1> to vector<8x32xi1>
      %152 = arith.select %151, %141, %61 : vector<8x32xi1>, vector<8x32xf32>
      %153 = arith.index_cast %112 : i32 to index
      %c0_53 = arith.constant 0 : index
      %c0_54 = arith.constant 0 : index
      %154 = vector.load %arg6[%153, %c0_53, %c0_54] : memref<8x8x32xf32, #tpu.memory_space<vmem>>, vector<1x8x32xf32>
      %155 = vector.shape_cast %154 : vector<1x8x32xf32> to vector<8x32xf32>
      %156 = vector.shape_cast %149 : vector<8x32xf32> to vector<1x8x32xf32>
      tpu.vector_store %arg6[%153, %c0_53, %c0_54], %156 {strides = array<i32>} : memref<8x8x32xf32, #tpu.memory_space<vmem>>, vector<1x8x32xf32>,
      %c7_i32_55 = arith.constant 7 : i32
      %157 = arith.subi %c7_i32_55, %112 : i32
      %158 = arith.index_cast %157 : i32 to index
      %c0_56 = arith.constant 0 : index
      %c0_57 = arith.constant 0 : index
      %159 = vector.load %arg3[%158, %c0_56, %c0_57] : memref<8x8x128xf32, #tpu.memory_space<vmem>>, vector<1x8x128xf32>
      %160 = vector.shape_cast %159 : vector<1x8x128xf32> to vector<8x128xf32>
      %161 = arith.truncf %103 : vector<8x32xf32> to vector<8x32xbf16>
      %cst_58 = arith.constant dense<0.000000e+00> : vector<8x128xf32>
      %162 = tpu.matmul %161, %5, %cst_58 {dimension_numbers = #tpu.dot_dimension_numbers<[1], [0], [0], [1], [0, 0, 1, 1], [], []>} : vector<8x32xbf16>, vector<32x128xbf16>, vector<8x128xf32> -> vector<8x128xf32>
      %163 = arith.addf %160, %162 : vector<8x128xf32>
      %164 = vector.extract_strided_slice %163 {offsets = [0, 0], sizes = [8, 32], strides = [1, 1]} : vector<8x128xf32> to vector<8x32xf32>
      %165 = arith.negf %164 : vector<8x32xf32>
      %166 = math.exp %165 : vector<8x32xf32>
      %cst_59 = arith.constant 1.000000e+00 : f32
      %167 = vector.broadcast %cst_59 : f32 to vector<8x32xf32>
      %168 = arith.addf %167, %166 : vector<8x32xf32>
      %169 = arith.divf %167, %168 : vector<8x32xf32>
      %170 = vector.extract_strided_slice %163 {offsets = [0, 32], sizes = [8, 32], strides = [1, 1]} : vector<8x128xf32> to vector<8x32xf32>
      %171 = arith.negf %170 : vector<8x32xf32>
      %172 = math.exp %171 : vector<8x32xf32>
      %cst_60 = arith.constant 1.000000e+00 : f32
      %173 = vector.broadcast %cst_60 : f32 to vector<8x32xf32>
      %174 = arith.addf %173, %172 : vector<8x32xf32>
      %175 = arith.divf %173, %174 : vector<8x32xf32>
      %176 = vector.extract_strided_slice %163 {offsets = [0, 64], sizes = [8, 32], strides = [1, 1]} : vector<8x128xf32> to vector<8x32xf32>
      %177 = math.tanh %176 : vector<8x32xf32>
      %178 = vector.extract_strided_slice %163 {offsets = [0, 96], sizes = [8, 32], strides = [1, 1]} : vector<8x128xf32> to vector<8x32xf32>
      %179 = arith.negf %178 : vector<8x32xf32>
      %180 = math.exp %179 : vector<8x32xf32>
      %cst_61 = arith.constant 1.000000e+00 : f32
      %181 = vector.broadcast %cst_61 : f32 to vector<8x32xf32>
      %182 = arith.addf %181, %180 : vector<8x32xf32>
      %183 = arith.divf %181, %182 : vector<8x32xf32>
      %184 = arith.mulf %175, %106 : vector<8x32xf32>
      %185 = arith.mulf %169, %177 : vector<8x32xf32>
      %186 = arith.addf %184, %185 : vector<8x32xf32>
      %187 = math.tanh %186 : vector<8x32xf32>
      %188 = arith.mulf %183, %187 : vector<8x32xf32>
      %189 = arith.addi %8, %157 : i32
      %190 = vector.broadcast %189 : i32 to vector<8x1xi32>
      %191 = arith.cmpi slt, %190, %3 : vector<8x1xi32>
      %192 = vector.shape_cast %191 : vector<8x1xi1> to vector<8x1xi1>
      %193 = vector.broadcast %192 : vector<8x1xi1> to vector<8x32xi1>
      %194 = arith.select %193, %188, %103 : vector<8x32xi1>, vector<8x32xf32>
      %195 = vector.shape_cast %191 : vector<8x1xi1> to vector<8x1xi1>
      %196 = vector.broadcast %195 : vector<8x1xi1> to vector<8x32xi1>
      %197 = arith.select %196, %186, %106 : vector<8x32xi1>, vector<8x32xf32>
      %198 = arith.index_cast %157 : i32 to index
      %c0_62 = arith.constant 0 : index
      %c0_63 = arith.constant 0 : index
      %199 = vector.load %arg7[%198, %c0_62, %c0_63] : memref<8x8x32xf32, #tpu.memory_space<vmem>>, vector<1x8x32xf32>
      %200 = vector.shape_cast %199 : vector<1x8x32xf32> to vector<8x32xf32>
      %201 = vector.shape_cast %194 : vector<8x32xf32> to vector<1x8x32xf32>
      tpu.vector_store %arg7[%198, %c0_62, %c0_63], %201 {strides = array<i32>} : memref<8x8x32xf32, #tpu.memory_space<vmem>>, vector<1x8x32xf32>,
      scf.yield %149, %152, %194, %197 : vector<8x32xf32>, vector<8x32xf32>, vector<8x32xf32>, vector<8x32xf32>
    }
    %c4_i32_17 = arith.constant 4 : i32
    %c0_18 = arith.constant 0 : index
    %c0_19 = arith.constant 0 : index
    %15 = vector.load %arg10[%c0_18, %c0_19] : memref<8x32xf32, #tpu.memory_space<vmem>>, vector<8x32xf32>
    tpu.vector_store %arg10[%c0_18, %c0_19], %14#0 {strides = array<i32>} : memref<8x32xf32, #tpu.memory_space<vmem>>, vector<8x32xf32>,
    %c0_20 = arith.constant 0 : index
    %c0_21 = arith.constant 0 : index
    %16 = vector.load %arg11[%c0_20, %c0_21] : memref<8x32xf32, #tpu.memory_space<vmem>>, vector<8x32xf32>
    tpu.vector_store %arg11[%c0_20, %c0_21], %14#1 {strides = array<i32>} : memref<8x32xf32, #tpu.memory_space<vmem>>, vector<8x32xf32>,
    %c0_22 = arith.constant 0 : index
    %c0_23 = arith.constant 0 : index
    %17 = vector.load %arg12[%c0_22, %c0_23] : memref<8x32xf32, #tpu.memory_space<vmem>>, vector<8x32xf32>
    tpu.vector_store %arg12[%c0_22, %c0_23], %14#2 {strides = array<i32>} : memref<8x32xf32, #tpu.memory_space<vmem>>, vector<8x32xf32>,
    %c0_24 = arith.constant 0 : index
    %c0_25 = arith.constant 0 : index
    %18 = vector.load %arg13[%c0_24, %c0_25] : memref<8x32xf32, #tpu.memory_space<vmem>>, vector<8x32xf32>
    tpu.vector_store %arg13[%c0_24, %c0_25], %14#3 {strides = array<i32>} : memref<8x32xf32, #tpu.memory_space<vmem>>, vector<8x32xf32>,
    %c0_26 = arith.constant 0 : index
    %c0_27 = arith.constant 0 : index
    %19 = vector.load %arg8[%c0_26, %c0_27] : memref<8x32xf32, #tpu.memory_space<vmem>>, vector<8x32xf32>
    tpu.vector_store %arg8[%c0_26, %c0_27], %14#0 {strides = array<i32>} : memref<8x32xf32, #tpu.memory_space<vmem>>, vector<8x32xf32>,
    %c0_28 = arith.constant 0 : index
    %c0_29 = arith.constant 0 : index
    %20 = vector.load %arg9[%c0_28, %c0_29] : memref<8x32xf32, #tpu.memory_space<vmem>>, vector<8x32xf32>
    tpu.vector_store %arg9[%c0_28, %c0_29], %14#2 {strides = array<i32>} : memref<8x32xf32, #tpu.memory_space<vmem>>, vector<8x32xf32>,
    return
  }
  func.func @transform_0(%arg0: i32) -> (i32, i32) {
    %c0_i32 = arith.constant 0 : i32
    %c0_i32_0 = arith.constant 0 : i32
    %c0_i32_1 = arith.constant 0 : i32
    return %c0_i32, %c0_i32_0 : i32, i32
  }
  func.func @transform_1(%arg0: i32) -> (i32, i32, i32) {
    %c0_i32 = arith.constant 0 : i32
    %c0_i32_0 = arith.constant 0 : i32
    %c0_i32_1 = arith.constant 0 : i32
    return %arg0, %c0_i32, %c0_i32_0 : i32, i32, i32
  }
  func.func @transform_2(%arg0: i32) -> (i32, i32, i32) {
    %c1_i32 = arith.constant 1 : i32
    %0 = arith.subi %c1_i32, %arg0 : i32
    %c0_i32 = arith.constant 0 : i32
    %c0_i32_0 = arith.constant 0 : i32
    %c0_i32_1 = arith.constant 0 : i32
    return %0, %c0_i32, %c0_i32_0 : i32, i32, i32
  }
  func.func @transform_3(%arg0: i32) -> (i32, i32) {
    %c0_i32 = arith.constant 0 : i32
    %c0_i32_0 = arith.constant 0 : i32
    %c0_i32_1 = arith.constant 0 : i32
    return %c0_i32, %c0_i32_0 : i32, i32
  }
  func.func @transform_4(%arg0: i32) -> (i32, i32) {
    %c0_i32 = arith.constant 0 : i32
    %c0_i32_0 = arith.constant 0 : i32
    %c0_i32_1 = arith.constant 0 : i32
    return %c0_i32, %c0_i32_0 : i32, i32
  }
  func.func @transform_5(%arg0: i32) -> (i32, i32, i32) {
    %c0_i32 = arith.constant 0 : i32
    %c0_i32_0 = arith.constant 0 : i32
    %c0_i32_1 = arith.constant 0 : i32
    return %arg0, %c0_i32, %c0_i32_0 : i32, i32, i32
  }
  func.func @transform_6(%arg0: i32) -> (i32, i32, i32) {
    %c1_i32 = arith.constant 1 : i32
    %0 = arith.subi %c1_i32, %arg0 : i32
    %c0_i32 = arith.constant 0 : i32
    %c0_i32_0 = arith.constant 0 : i32
    %c0_i32_1 = arith.constant 0 : i32
    return %0, %c0_i32, %c0_i32_0 : i32, i32, i32
  }
  func.func @transform_7(%arg0: i32) -> (i32, i32) {
    %c0_i32 = arith.constant 0 : i32
    %c0_i32_0 = arith.constant 0 : i32
    %c0_i32_1 = arith.constant 0 : i32
    return %c0_i32, %c0_i32_0 : i32, i32
  }
  func.func @transform_8(%arg0: i32) -> (i32, i32) {
    %c0_i32 = arith.constant 0 : i32
    %c0_i32_0 = arith.constant 0 : i32
    %c0_i32_1 = arith.constant 0 : i32
    return %c0_i32, %c0_i32_0 : i32, i32
  }
}

module attributes {stable_mosaic.version = 11 : i64} {
  func.func @_bilstm_chunk_kernel(%arg0: i32, %arg1: memref<8x1xi32, #tpu.memory_space<vmem>>, %arg2: memref<8x8x128xf32, #tpu.memory_space<vmem>>, %arg3: memref<8x8x128xf32, #tpu.memory_space<vmem>>, %arg4: memref<32x128xbf16, #tpu.memory_space<vmem>>, %arg5: memref<32x128xbf16, #tpu.memory_space<vmem>>, %arg6: memref<8x8x32xf32, #tpu.memory_space<vmem>>, %arg7: memref<8x8x32xf32, #tpu.memory_space<vmem>>, %arg8: memref<8x32xf32, #tpu.memory_space<vmem>>, %arg9: memref<8x32xf32, #tpu.memory_space<vmem>>, %arg10: memref<8x32xf32, #tpu.memory_space<vmem>>, %arg11: memref<8x32xf32, #tpu.memory_space<vmem>>, %arg12: memref<8x32xf32, #tpu.memory_space<vmem>>, %arg13: memref<8x32xf32, #tpu.memory_space<vmem>>) attributes {dimension_semantics = [#tpu.dimension_semantics<arbitrary>], iteration_bounds = array<i64: 2>, scalar_prefetch = 0 : i64, scratch_operands = 4 : i64, tpu.core_type = #tpu.core_type<tc>, window_params = [{pipeline_mode = #tpu.pipeline_mode<synchronous>, transform_indices = @transform_0, window_bounds = array<i64: 8, 1>}, {transform_indices = @transform_1, window_bounds = array<i64: 8, 8, 128>}, {transform_indices = @transform_2, window_bounds = array<i64: 8, 8, 128>}, {pipeline_mode = #tpu.pipeline_mode<synchronous>, transform_indices = @transform_3, window_bounds = array<i64: 32, 128>}, {pipeline_mode = #tpu.pipeline_mode<synchronous>, transform_indices = @transform_4, window_bounds = array<i64: 32, 128>}, {transform_indices = @transform_5, window_bounds = array<i64: 8, 8, 32>}, {transform_indices = @transform_6, window_bounds = array<i64: 8, 8, 32>}, {pipeline_mode = #tpu.pipeline_mode<synchronous>, transform_indices = @transform_7, window_bounds = array<i64: 8, 32>}, {pipeline_mode = #tpu.pipeline_mode<synchronous>, transform_indices = @transform_8, window_bounds = array<i64: 8, 32>}]} {
    %c0_i32 = arith.constant 0 : i32
    %0 = arith.cmpi eq, %arg0, %c0_i32 : i32
    %1 = arith.extui %0 : i1 to i32
    %c0_i32_0 = arith.constant 0 : i32
    %2 = arith.cmpi ne, %1, %c0_i32_0 : i32
    scf.if %2 {
      %cst = arith.constant 0.000000e+00 : f32
      %21 = vector.broadcast %cst : f32 to vector<8x32xf32>
      %c0_30 = arith.constant 0 : index
      %c0_31 = arith.constant 0 : index
      %22 = vector.load %arg10[%c0_30, %c0_31] : memref<8x32xf32, #tpu.memory_space<vmem>>, vector<8x32xf32>
      tpu.vector_store %arg10[%c0_30, %c0_31], %21 {strides = array<i32>} : memref<8x32xf32, #tpu.memory_space<vmem>>, vector<8x32xf32>,
      %c0_32 = arith.constant 0 : index
      %c0_33 = arith.constant 0 : index
      %23 = vector.load %arg11[%c0_32, %c0_33] : memref<8x32xf32, #tpu.memory_space<vmem>>, vector<8x32xf32>
      tpu.vector_store %arg11[%c0_32, %c0_33], %21 {strides = array<i32>} : memref<8x32xf32, #tpu.memory_space<vmem>>, vector<8x32xf32>,
      %c0_34 = arith.constant 0 : index
      %c0_35 = arith.constant 0 : index
      %24 = vector.load %arg12[%c0_34, %c0_35] : memref<8x32xf32, #tpu.memory_space<vmem>>, vector<8x32xf32>
      tpu.vector_store %arg12[%c0_34, %c0_35], %21 {strides = array<i32>} : memref<8x32xf32, #tpu.memory_space<vmem>>, vector<8x32xf32>,
      %c0_36 = arith.constant 0 : index
      %c0_37 = arith.constant 0 : index
      %25 = vector.load %arg13[%c0_36, %c0_37] : memref<8x32xf32, #tpu.memory_space<vmem>>, vector<8x32xf32>
      tpu.vector_store %arg13[%c0_36, %c0_37], %21 {strides = array<i32>} : memref<8x32xf32, #tpu.memory_space<vmem>>, vector<8x32xf32>,
    } else {
    }
    %c0 = arith.constant 0 : index
    %c0_1 = arith.constant 0 : index
    %3 = vector.load %arg1[%c0, %c0_1] : memref<8x1xi32, #tpu.memory_space<vmem>>, vector<8x1xi32>
    %c0_2 = arith.constant 0 : index
    %c0_3 = arith.constant 0 : index
    %4 = vector.load %arg4[%c0_2, %c0_3] : memref<32x128xbf16, #tpu.memory_space<vmem>>, vector<32x128xbf16>
    %c0_4 = arith.constant 0 : index
    %c0_5 = arith.constant 0 : index
    %5 = vector.load %arg5[%c0_4, %c0_5] : memref<32x128xbf16, #tpu.memory_space<vmem>>, vector<32x128xbf16>
    %c8_i32 = arith.constant 8 : i32
    %6 = arith.muli %arg0, %c8_i32 : i32
    %c1_i32 = arith.constant 1 : i32
    %7 = arith.subi %c1_i32, %arg0 : i32
    %c8_i32_6 = arith.constant 8 : i32
    %8 = arith.muli %7, %c8_i32_6 : i32
    %c0_7 = arith.constant 0 : index
    %c0_8 = arith.constant 0 : index
    %9 = vector.load %arg10[%c0_7, %c0_8] : memref<8x32xf32, #tpu.memory_space<vmem>>, vector<8x32xf32>
    %c0_9 = arith.constant 0 : index
    %c0_10 = arith.constant 0 : index
    %10 = vector.load %arg11[%c0_9, %c0_10] : memref<8x32xf32, #tpu.memory_space<vmem>>, vector<8x32xf32>
    %c0_11 = arith.constant 0 : index
    %c0_12 = arith.constant 0 : index
    %11 = vector.load %arg12[%c0_11, %c0_12] : memref<8x32xf32, #tpu.memory_space<vmem>>, vector<8x32xf32>
    %c0_13 = arith.constant 0 : index
    %c0_14 = arith.constant 0 : index
    %12 = vector.load %arg13[%c0_13, %c0_14] : memref<8x32xf32, #tpu.memory_space<vmem>>, vector<8x32xf32>
    %c0_i32_15 = arith.constant 0 : i32
    %c4_i32 = arith.constant 4 : i32
    %13 = arith.addi %c0_i32_15, %c4_i32 : i32
    %c1_i32_16 = arith.constant 1 : i32
    %14:4 = scf.for %arg14 = %c0_i32_15 to %13 step %c1_i32_16 iter_args(%arg15 = %9, %arg16 = %10, %arg17 = %11, %arg18 = %12) -> (vector<8x32xf32>, vector<8x32xf32>, vector<8x32xf32>, vector<8x32xf32>)  : i32 {
      %c2_i32 = arith.constant 2 : i32
      %21 = arith.muli %c2_i32, %arg14 : i32
      %22 = arith.index_cast %21 : i32 to index
      %c0_30 = arith.constant 0 : index
      %c0_31 = arith.constant 0 : index
      %23 = vector.load %arg2[%22, %c0_30, %c0_31] : memref<8x8x128xf32, #tpu.memory_space<vmem>>, vector<1x8x128xf32>
      %24 = vector.shape_cast %23 : vector<1x8x128xf32> to vector<8x128xf32>
      %25 = arith.truncf %arg15 : vector<8x32xf32> to vector<8x32xbf16>
      %cst = arith.constant dense<0.000000e+00> : vector<8x128xf32>
      %26 = tpu.matmul %25, %4, %cst {dimension_numbers = #tpu.dot_dimension_numbers<[1], [0], [0], [1], [0, 0, 1, 1], [], []>} : vector<8x32xbf16>, vector<32x128xbf16>, vector<8x128xf32> -> vector<8x128xf32>
      %27 = arith.addf %24, %26 : vector<8x128xf32>
      %28 = vector.extract_strided_slice %27 {offsets = [0, 0], sizes = [8, 32], strides = [1, 1]} : vector<8x128xf32> to vector<8x32xf32>
      %29 = arith.negf %28 : vector<8x32xf32>
      %30 = math.exp %29 : vector<8x32xf32>
      %cst_32 = arith.constant 1.000000e+00 : f32
      %31 = vector.broadcast %cst_32 : f32 to vector<8x32xf32>
      %32 = arith.addf %31, %30 : vector<8x32xf32>
      %33 = arith.divf %31, %32 : vector<8x32xf32>
      %34 = vector.extract_strided_slice %27 {offsets = [0, 32], sizes = [8, 32], strides = [1, 1]} : vector<8x128xf32> to vector<8x32xf32>
      %35 = arith.negf %34 : vector<8x32xf32>
      %36 = math.exp %35 : vector<8x32xf32>
      %cst_33 = arith.constant 1.000000e+00 : f32
      %37 = vector.broadcast %cst_33 : f32 to vector<8x32xf32>
      %38 = arith.addf %37, %36 : vector<8x32xf32>
      %39 = arith.divf %37, %38 : vector<8x32xf32>
      %40 = vector.extract_strided_slice %27 {offsets = [0, 64], sizes = [8, 32], strides = [1, 1]} : vector<8x128xf32> to vector<8x32xf32>
      %41 = math.tanh %40 : vector<8x32xf32>
      %42 = vector.extract_strided_slice %27 {offsets = [0, 96], sizes = [8, 32], strides = [1, 1]} : vector<8x128xf32> to vector<8x32xf32>
      %43 = arith.negf %42 : vector<8x32xf32>
      %44 = math.exp %43 : vector<8x32xf32>
      %cst_34 = arith.constant 1.000000e+00 : f32
      %45 = vector.broadcast %cst_34 : f32 to vector<8x32xf32>
      %46 = arith.addf %45, %44 : vector<8x32xf32>
      %47 = arith.divf %45, %46 : vector<8x32xf32>
      %48 = arith.mulf %39, %arg16 : vector<8x32xf32>
      %49 = arith.mulf %33, %41 : vector<8x32xf32>
      %50 = arith.addf %48, %49 : vector<8x32xf32>
      %51 = math.tanh %50 : vector<8x32xf32>
      %52 = arith.mulf %47, %51 : vector<8x32xf32>
      %53 = arith.addi %6, %21 : i32
      %54 = vector.broadcast %53 : i32 to vector<8x1xi32>
      %55 = arith.cmpi slt, %54, %3 : vector<8x1xi32>
      %56 = vector.shape_cast %55 : vector<8x1xi1> to vector<8x1xi1>
      %57 = vector.broadcast %56 : vector<8x1xi1> to vector<8x32xi1>
      %58 = arith.select %57, %52, %arg15 : vector<8x32xi1>, vector<8x32xf32>
      %59 = vector.shape_cast %55 : vector<8x1xi1> to vector<8x1xi1>
      %60 = vector.broadcast %59 : vector<8x1xi1> to vector<8x32xi1>
      %61 = arith.select %60, %50, %arg16 : vector<8x32xi1>, vector<8x32xf32>
      %62 = arith.index_cast %21 : i32 to index
      %c0_35 = arith.constant 0 : index
      %c0_36 = arith.constant 0 : index
      %63 = vector.load %arg6[%62, %c0_35, %c0_36] : memref<8x8x32xf32, #tpu.memory_space<vmem>>, vector<1x8x32xf32>
      %64 = vector.shape_cast %63 : vector<1x8x32xf32> to vector<8x32xf32>
      %65 = vector.shape_cast %58 : vector<8x32xf32> to vector<1x8x32xf32>
      tpu.vector_store %arg6[%62, %c0_35, %c0_36], %65 {strides = array<i32>} : memref<8x8x32xf32, #tpu.memory_space<vmem>>, vector<1x8x32xf32>,
      %c7_i32 = arith.constant 7 : i32
      %66 = arith.subi %c7_i32, %21 : i32
      %67 = arith.index_cast %66 : i32 to index
      %c0_37 = arith.constant 0 : index
      %c0_38 = arith.constant 0 : index
      %68 = vector.load %arg3[%67, %c0_37, %c0_38] : memref<8x8x128xf32, #tpu.memory_space<vmem>>, vector<1x8x128xf32>
      %69 = vector.shape_cast %68 : vector<1x8x128xf32> to vector<8x128xf32>
      %70 = arith.truncf %arg17 : vector<8x32xf32> to vector<8x32xbf16>
      %cst_39 = arith.constant dense<0.000000e+00> : vector<8x128xf32>
      %71 = tpu.matmul %70, %5, %cst_39 {dimension_numbers = #tpu.dot_dimension_numbers<[1], [0], [0], [1], [0, 0, 1, 1], [], []>} : vector<8x32xbf16>, vector<32x128xbf16>, vector<8x128xf32> -> vector<8x128xf32>
      %72 = arith.addf %69, %71 : vector<8x128xf32>
      %73 = vector.extract_strided_slice %72 {offsets = [0, 0], sizes = [8, 32], strides = [1, 1]} : vector<8x128xf32> to vector<8x32xf32>
      %74 = arith.negf %73 : vector<8x32xf32>
      %75 = math.exp %74 : vector<8x32xf32>
      %cst_40 = arith.constant 1.000000e+00 : f32
      %76 = vector.broadcast %cst_40 : f32 to vector<8x32xf32>
      %77 = arith.addf %76, %75 : vector<8x32xf32>
      %78 = arith.divf %76, %77 : vector<8x32xf32>
      %79 = vector.extract_strided_slice %72 {offsets = [0, 32], sizes = [8, 32], strides = [1, 1]} : vector<8x128xf32> to vector<8x32xf32>
      %80 = arith.negf %79 : vector<8x32xf32>
      %81 = math.exp %80 : vector<8x32xf32>
      %cst_41 = arith.constant 1.000000e+00 : f32
      %82 = vector.broadcast %cst_41 : f32 to vector<8x32xf32>
      %83 = arith.addf %82, %81 : vector<8x32xf32>
      %84 = arith.divf %82, %83 : vector<8x32xf32>
      %85 = vector.extract_strided_slice %72 {offsets = [0, 64], sizes = [8, 32], strides = [1, 1]} : vector<8x128xf32> to vector<8x32xf32>
      %86 = math.tanh %85 : vector<8x32xf32>
      %87 = vector.extract_strided_slice %72 {offsets = [0, 96], sizes = [8, 32], strides = [1, 1]} : vector<8x128xf32> to vector<8x32xf32>
      %88 = arith.negf %87 : vector<8x32xf32>
      %89 = math.exp %88 : vector<8x32xf32>
      %cst_42 = arith.constant 1.000000e+00 : f32
      %90 = vector.broadcast %cst_42 : f32 to vector<8x32xf32>
      %91 = arith.addf %90, %89 : vector<8x32xf32>
      %92 = arith.divf %90, %91 : vector<8x32xf32>
      %93 = arith.mulf %84, %arg18 : vector<8x32xf32>
      %94 = arith.mulf %78, %86 : vector<8x32xf32>
      %95 = arith.addf %93, %94 : vector<8x32xf32>
      %96 = math.tanh %95 : vector<8x32xf32>
      %97 = arith.mulf %92, %96 : vector<8x32xf32>
      %98 = arith.addi %8, %66 : i32
      %99 = vector.broadcast %98 : i32 to vector<8x1xi32>
      %100 = arith.cmpi slt, %99, %3 : vector<8x1xi32>
      %101 = vector.shape_cast %100 : vector<8x1xi1> to vector<8x1xi1>
      %102 = vector.broadcast %101 : vector<8x1xi1> to vector<8x32xi1>
      %103 = arith.select %102, %97, %arg17 : vector<8x32xi1>, vector<8x32xf32>
      %104 = vector.shape_cast %100 : vector<8x1xi1> to vector<8x1xi1>
      %105 = vector.broadcast %104 : vector<8x1xi1> to vector<8x32xi1>
      %106 = arith.select %105, %95, %arg18 : vector<8x32xi1>, vector<8x32xf32>
      %107 = arith.index_cast %66 : i32 to index
      %c0_43 = arith.constant 0 : index
      %c0_44 = arith.constant 0 : index
      %108 = vector.load %arg7[%107, %c0_43, %c0_44] : memref<8x8x32xf32, #tpu.memory_space<vmem>>, vector<1x8x32xf32>
      %109 = vector.shape_cast %108 : vector<1x8x32xf32> to vector<8x32xf32>
      %110 = vector.shape_cast %103 : vector<8x32xf32> to vector<1x8x32xf32>
      tpu.vector_store %arg7[%107, %c0_43, %c0_44], %110 {strides = array<i32>} : memref<8x8x32xf32, #tpu.memory_space<vmem>>, vector<1x8x32xf32>,
      %c2_i32_45 = arith.constant 2 : i32
      %111 = arith.muli %c2_i32_45, %arg14 : i32
      %c1_i32_46 = arith.constant 1 : i32
      %112 = arith.addi %111, %c1_i32_46 : i32
      %113 = arith.index_cast %112 : i32 to index
      %c0_47 = arith.constant 0 : index
      %c0_48 = arith.constant 0 : index
      %114 = vector.load %arg2[%113, %c0_47, %c0_48] : memref<8x8x128xf32, #tpu.memory_space<vmem>>, vector<1x8x128xf32>
      %115 = vector.shape_cast %114 : vector<1x8x128xf32> to vector<8x128xf32>
      %116 = arith.truncf %58 : vector<8x32xf32> to vector<8x32xbf16>
      %cst_49 = arith.constant dense<0.000000e+00> : vector<8x128xf32>
      %117 = tpu.matmul %116, %4, %cst_49 {dimension_numbers = #tpu.dot_dimension_numbers<[1], [0], [0], [1], [0, 0, 1, 1], [], []>} : vector<8x32xbf16>, vector<32x128xbf16>, vector<8x128xf32> -> vector<8x128xf32>
      %118 = arith.addf %115, %117 : vector<8x128xf32>
      %119 = vector.extract_strided_slice %118 {offsets = [0, 0], sizes = [8, 32], strides = [1, 1]} : vector<8x128xf32> to vector<8x32xf32>
      %120 = arith.negf %119 : vector<8x32xf32>
      %121 = math.exp %120 : vector<8x32xf32>
      %cst_50 = arith.constant 1.000000e+00 : f32
      %122 = vector.broadcast %cst_50 : f32 to vector<8x32xf32>
      %123 = arith.addf %122, %121 : vector<8x32xf32>
      %124 = arith.divf %122, %123 : vector<8x32xf32>
      %125 = vector.extract_strided_slice %118 {offsets = [0, 32], sizes = [8, 32], strides = [1, 1]} : vector<8x128xf32> to vector<8x32xf32>
      %126 = arith.negf %125 : vector<8x32xf32>
      %127 = math.exp %126 : vector<8x32xf32>
      %cst_51 = arith.constant 1.000000e+00 : f32
      %128 = vector.broadcast %cst_51 : f32 to vector<8x32xf32>
      %129 = arith.addf %128, %127 : vector<8x32xf32>
      %130 = arith.divf %128, %129 : vector<8x32xf32>
      %131 = vector.extract_strided_slice %118 {offsets = [0, 64], sizes = [8, 32], strides = [1, 1]} : vector<8x128xf32> to vector<8x32xf32>
      %132 = math.tanh %131 : vector<8x32xf32>
      %133 = vector.extract_strided_slice %118 {offsets = [0, 96], sizes = [8, 32], strides = [1, 1]} : vector<8x128xf32> to vector<8x32xf32>
      %134 = arith.negf %133 : vector<8x32xf32>
      %135 = math.exp %134 : vector<8x32xf32>
      %cst_52 = arith.constant 1.000000e+00 : f32
      %136 = vector.broadcast %cst_52 : f32 to vector<8x32xf32>
      %137 = arith.addf %136, %135 : vector<8x32xf32>
      %138 = arith.divf %136, %137 : vector<8x32xf32>
      %139 = arith.mulf %130, %61 : vector<8x32xf32>
      %140 = arith.mulf %124, %132 : vector<8x32xf32>
      %141 = arith.addf %139, %140 : vector<8x32xf32>
      %142 = math.tanh %141 : vector<8x32xf32>
      %143 = arith.mulf %138, %142 : vector<8x32xf32>
      %144 = arith.addi %6, %112 : i32
      %145 = vector.broadcast %144 : i32 to vector<8x1xi32>
      %146 = arith.cmpi slt, %145, %3 : vector<8x1xi32>
      %147 = vector.shape_cast %146 : vector<8x1xi1> to vector<8x1xi1>
      %148 = vector.broadcast %147 : vector<8x1xi1> to vector<8x32xi1>
      %149 = arith.select %148, %143, %58 : vector<8x32xi1>, vector<8x32xf32>
      %150 = vector.shape_cast %146 : vector<8x1xi1> to vector<8x1xi1>
      %151 = vector.broadcast %150 : vector<8x1xi1> to vector<8x32xi1>
      %152 = arith.select %151, %141, %61 : vector<8x32xi1>, vector<8x32xf32>
      %153 = arith.index_cast %112 : i32 to index
      %c0_53 = arith.constant 0 : index
      %c0_54 = arith.constant 0 : index
      %154 = vector.load %arg6[%153, %c0_53, %c0_54] : memref<8x8x32xf32, #tpu.memory_space<vmem>>, vector<1x8x32xf32>
      %155 = vector.shape_cast %154 : vector<1x8x32xf32> to vector<8x32xf32>
      %156 = vector.shape_cast %149 : vector<8x32xf32> to vector<1x8x32xf32>
      tpu.vector_store %arg6[%153, %c0_53, %c0_54], %156 {strides = array<i32>} : memref<8x8x32xf32, #tpu.memory_space<vmem>>, vector<1x8x32xf32>,
      %c7_i32_55 = arith.constant 7 : i32
      %157 = arith.subi %c7_i32_55, %112 : i32
      %158 = arith.index_cast %157 : i32 to index
      %c0_56 = arith.constant 0 : index
      %c0_57 = arith.constant 0 : index
      %159 = vector.load %arg3[%158, %c0_56, %c0_57] : memref<8x8x128xf32, #tpu.memory_space<vmem>>, vector<1x8x128xf32>
      %160 = vector.shape_cast %159 : vector<1x8x128xf32> to vector<8x128xf32>
      %161 = arith.truncf %103 : vector<8x32xf32> to vector<8x32xbf16>
      %cst_58 = arith.constant dense<0.000000e+00> : vector<8x128xf32>
      %162 = tpu.matmul %161, %5, %cst_58 {dimension_numbers = #tpu.dot_dimension_numbers<[1], [0], [0], [1], [0, 0, 1, 1], [], []>} : vector<8x32xbf16>, vector<32x128xbf16>, vector<8x128xf32> -> vector<8x128xf32>
      %163 = arith.addf %160, %162 : vector<8x128xf32>
      %164 = vector.extract_strided_slice %163 {offsets = [0, 0], sizes = [8, 32], strides = [1, 1]} : vector<8x128xf32> to vector<8x32xf32>
      %165 = arith.negf %164 : vector<8x32xf32>
      %166 = math.exp %165 : vector<8x32xf32>
      %cst_59 = arith.constant 1.000000e+00 : f32
      %167 = vector.broadcast %cst_59 : f32 to vector<8x32xf32>
      %168 = arith.addf %167, %166 : vector<8x32xf32>
      %169 = arith.divf %167, %168 : vector<8x32xf32>
      %170 = vector.extract_strided_slice %163 {offsets = [0, 32], sizes = [8, 32], strides = [1, 1]} : vector<8x128xf32> to vector<8x32xf32>
      %171 = arith.negf %170 : vector<8x32xf32>
      %172 = math.exp %171 : vector<8x32xf32>
      %cst_60 = arith.constant 1.000000e+00 : f32
      %173 = vector.broadcast %cst_60 : f32 to vector<8x32xf32>
      %174 = arith.addf %173, %172 : vector<8x32xf32>
      %175 = arith.divf %173, %174 : vector<8x32xf32>
      %176 = vector.extract_strided_slice %163 {offsets = [0, 64], sizes = [8, 32], strides = [1, 1]} : vector<8x128xf32> to vector<8x32xf32>
      %177 = math.tanh %176 : vector<8x32xf32>
      %178 = vector.extract_strided_slice %163 {offsets = [0, 96], sizes = [8, 32], strides = [1, 1]} : vector<8x128xf32> to vector<8x32xf32>
      %179 = arith.negf %178 : vector<8x32xf32>
      %180 = math.exp %179 : vector<8x32xf32>
      %cst_61 = arith.constant 1.000000e+00 : f32
      %181 = vector.broadcast %cst_61 : f32 to vector<8x32xf32>
      %182 = arith.addf %181, %180 : vector<8x32xf32>
      %183 = arith.divf %181, %182 : vector<8x32xf32>
      %184 = arith.mulf %175, %106 : vector<8x32xf32>
      %185 = arith.mulf %169, %177 : vector<8x32xf32>
      %186 = arith.addf %184, %185 : vector<8x32xf32>
      %187 = math.tanh %186 : vector<8x32xf32>
      %188 = arith.mulf %183, %187 : vector<8x32xf32>
      %189 = arith.addi %8, %157 : i32
      %190 = vector.broadcast %189 : i32 to vector<8x1xi32>
      %191 = arith.cmpi slt, %190, %3 : vector<8x1xi32>
      %192 = vector.shape_cast %191 : vector<8x1xi1> to vector<8x1xi1>
      %193 = vector.broadcast %192 : vector<8x1xi1> to vector<8x32xi1>
      %194 = arith.select %193, %188, %103 : vector<8x32xi1>, vector<8x32xf32>
      %195 = vector.shape_cast %191 : vector<8x1xi1> to vector<8x1xi1>
      %196 = vector.broadcast %195 : vector<8x1xi1> to vector<8x32xi1>
      %197 = arith.select %196, %186, %106 : vector<8x32xi1>, vector<8x32xf32>
      %198 = arith.index_cast %157 : i32 to index
      %c0_62 = arith.constant 0 : index
      %c0_63 = arith.constant 0 : index
      %199 = vector.load %arg7[%198, %c0_62, %c0_63] : memref<8x8x32xf32, #tpu.memory_space<vmem>>, vector<1x8x32xf32>
      %200 = vector.shape_cast %199 : vector<1x8x32xf32> to vector<8x32xf32>
      %201 = vector.shape_cast %194 : vector<8x32xf32> to vector<1x8x32xf32>
      tpu.vector_store %arg7[%198, %c0_62, %c0_63], %201 {strides = array<i32>} : memref<8x8x32xf32, #tpu.memory_space<vmem>>, vector<1x8x32xf32>,
      scf.yield %149, %152, %194, %197 : vector<8x32xf32>, vector<8x32xf32>, vector<8x32xf32>, vector<8x32xf32>
    }
    %c4_i32_17 = arith.constant 4 : i32
    %c0_18 = arith.constant 0 : index
    %c0_19 = arith.constant 0 : index
    %15 = vector.load %arg10[%c0_18, %c0_19] : memref<8x32xf32, #tpu.memory_space<vmem>>, vector<8x32xf32>
    tpu.vector_store %arg10[%c0_18, %c0_19], %14#0 {strides = array<i32>} : memref<8x32xf32, #tpu.memory_space<vmem>>, vector<8x32xf32>,
    %c0_20 = arith.constant 0 : index
    %c0_21 = arith.constant 0 : index
    %16 = vector.load %arg11[%c0_20, %c0_21] : memref<8x32xf32, #tpu.memory_space<vmem>>, vector<8x32xf32>
    tpu.vector_store %arg11[%c0_20, %c0_21], %14#1 {strides = array<i32>} : memref<8x32xf32, #tpu.memory_space<vmem>>, vector<8x32xf32>,
    %c0_22 = arith.constant 0 : index
    %c0_23 = arith.constant 0 : index
    %17 = vector.load %arg12[%c0_22, %c0_23] : memref<8x32xf32, #tpu.memory_space<vmem>>, vector<8x32xf32>
    tpu.vector_store %arg12[%c0_22, %c0_23], %14#2 {strides = array<i32>} : memref<8x32xf32, #tpu.memory_space<vmem>>, vector<8x32xf32>,
    %c0_24 = arith.constant 0 : index
    %c0_25 = arith.constant 0 : index
    %18 = vector.load %arg13[%c0_24, %c0_25] : memref<8x32xf32, #tpu.memory_space<vmem>>, vector<8x32xf32>
    tpu.vector_store %arg13[%c0_24, %c0_25], %14#3 {strides = array<i32>} : memref<8x32xf32, #tpu.memory_space<vmem>>, vector<8x32xf32>,
    %c0_26 = arith.constant 0 : index
    %c0_27 = arith.constant 0 : index
    %19 = vector.load %arg8[%c0_26, %c0_27] : memref<8x32xf32, #tpu.memory_space<vmem>>, vector<8x32xf32>
    tpu.vector_store %arg8[%c0_26, %c0_27], %14#0 {strides = array<i32>} : memref<8x32xf32, #tpu.memory_space<vmem>>, vector<8x32xf32>,
    %c0_28 = arith.constant 0 : index
    %c0_29 = arith.constant 0 : index
    %20 = vector.load %arg9[%c0_28, %c0_29] : memref<8x32xf32, #tpu.memory_space<vmem>>, vector<8x32xf32>
    tpu.vector_store %arg9[%c0_28, %c0_29], %14#2 {strides = array<i32>} : memref<8x32xf32, #tpu.memory_space<vmem>>, vector<8x32xf32>,
    return
  }
  func.func @transform_0(%arg0: i32) -> (i32, i32) {
    %c0_i32 = arith.constant 0 : i32
    %c0_i32_0 = arith.constant 0 : i32
    %c0_i32_1 = arith.constant 0 : i32
    return %c0_i32, %c0_i32_0 : i32, i32
  }
  func.func @transform_1(%arg0: i32) -> (i32, i32, i32) {
    %c0_i32 = arith.constant 0 : i32
    %c0_i32_0 = arith.constant 0 : i32
    %c0_i32_1 = arith.constant 0 : i32
    return %arg0, %c0_i32, %c0_i32_0 : i32, i32, i32
  }
  func.func @transform_2(%arg0: i32) -> (i32, i32, i32) {
    %c1_i32 = arith.constant 1 : i32
    %0 = arith.subi %c1_i32, %arg0 : i32
    %c0_i32 = arith.constant 0 : i32
    %c0_i32_0 = arith.constant 0 : i32
    %c0_i32_1 = arith.constant 0 : i32
    return %0, %c0_i32, %c0_i32_0 : i32, i32, i32
  }
  func.func @transform_3(%arg0: i32) -> (i32, i32) {
    %c0_i32 = arith.constant 0 : i32
    %c0_i32_0 = arith.constant 0 : i32
    %c0_i32_1 = arith.constant 0 : i32
    return %c0_i32, %c0_i32_0 : i32, i32
  }
  func.func @transform_4(%arg0: i32) -> (i32, i32) {
    %c0_i32 = arith.constant 0 : i32
    %c0_i32_0 = arith.constant 0 : i32
    %c0_i32_1 = arith.constant 0 : i32
    return %c0_i32, %c0_i32_0 : i32, i32
  }
  func.func @transform_5(%arg0: i32) -> (i32, i32, i32) {
    %c0_i32 = arith.constant 0 : i32
    %c0_i32_0 = arith.constant 0 : i32
    %c0_i32_1 = arith.constant 0 : i32
    return %arg0, %c0_i32, %c0_i32_0 : i32, i32, i32
  }
  func.func @transform_6(%arg0: i32) -> (i32, i32, i32) {
    %c1_i32 = arith.constant 1 : i32
    %0 = arith.subi %c1_i32, %arg0 : i32
    %c0_i32 = arith.constant 0 : i32
    %c0_i32_0 = arith.constant 0 : i32
    %c0_i32_1 = arith.constant 0 : i32
    return %0, %c0_i32, %c0_i32_0 : i32, i32, i32
  }
  func.func @transform_7(%arg0: i32) -> (i32, i32) {
    %c0_i32 = arith.constant 0 : i32
    %c0_i32_0 = arith.constant 0 : i32
    %c0_i32_1 = arith.constant 0 : i32
    return %c0_i32, %c0_i32_0 : i32, i32
  }
  func.func @transform_8(%arg0: i32) -> (i32, i32) {
    %c0_i32 = arith.constant 0 : i32
    %c0_i32_0 = arith.constant 0 : i32
    %c0_i32_1 = arith.constant 0 : i32
    return %c0_i32, %c0_i32_0 : i32, i32
  }
}

</mosaic_0001>

<llo_original>
// kernel: vlstm_forward.2
$region0: #{vlstm_forward.2}
  #allocation0 [shape = 'u32[]', space=smem, size = 0x4, offset = 0x4, fixed_abs, tag = 'smem constant byte address 0x4 - core index']
  #allocation1 [shape = 'u32[144,128]{1,0:T(1,128)}', space=vmem, size = 0x12000, scoped, tag = 'internal scratch']
  #allocation2 [shape = 'f32[8,32]{1,0:T(8,128)}', space=vmem, size = 0x1000, scoped, tag = 'scratch operand']
  #allocation3 [shape = 'f32[8,32]{1,0:T(8,128)}', space=vmem, size = 0x1000, scoped, tag = 'scratch operand']
  #allocation4 [shape = 'f32[8,32]{1,0:T(8,128)}', space=vmem, size = 0x1000, scoped, tag = 'scratch operand']
  #allocation5 [shape = 'f32[8,32]{1,0:T(8,128)}', space=vmem, size = 0x1000, scoped, tag = 'scratch operand']
  %s0 = inlined_call_operand.vmem [shape: s32[8,1], index: 0, kind: input, shape index: {}]
  %s1 = inlined_call_operand.vmem [shape: f32[16,8,128], index: 1, kind: input, shape index: {}]
  %s2 = inlined_call_operand.vmem [shape: f32[16,8,128], index: 2, kind: input, shape index: {}]
  %s3 = inlined_call_operand.vmem [shape: bf16[32,128], index: 3, kind: input, shape index: {}]
  %s4 = inlined_call_operand.vmem [shape: bf16[32,128], index: 4, kind: input, shape index: {}]
  %s5 = inlined_call_operand.vmem [shape: f32[16,8,32], index: 5, kind: output, shape index: {0}]
  %s6 = inlined_call_operand.vmem [shape: f32[16,8,32], index: 6, kind: output, shape index: {1}]
  %s7 = inlined_call_operand.hbm [shape: f32[8,32], index: 7, kind: output, shape index: {2}]
  %s8 = inlined_call_operand.hbm [shape: f32[8,32], index: 8, kind: output, shape index: {3}]
  %9 = xla_tuple %s5, %s6, %s7, %s8
  %s10 = sld [smem:[#allocation0]]
  $region88: #{vlstm_forward.2} parent=0
    _
  %s12 = ssub.s32 1, %s10
  %s13 = scalar_select 0, %s12, %s10
  $region1: #{vlstm_forward.2} parent=0
    #allocation6 [shape = 'u8[4096]{0}', space=vmem, size = 0x1000, scoped, tag = 'output window, operand 2, single buffered']
    #allocation7 [shape = 's32[2]{0}', space=sflag, size = 0x8, scoped, tag = 'scoped memory for vlstm_forward.2']
    #allocation8 [shape = 'u8[4096]{0}', space=vmem, size = 0x1000, scoped, tag = 'output window, operand 3, single buffered']
    #allocation9 [shape = 's32[1]{0}', space=sflag, size = 0x4, scoped, tag = 'scoped memory for vlstm_forward.2']
    %14 = vsyncpa [#allocation7], 0
    %15 = vsyncpa [#allocation9], 0
    loop: start=0, step=1, limit=4
    $region2: #{vlstm_forward.2} parent=1 // loop_pre_header
      _
    $region3: #{vlstm_forward.2} parent=1 // loop_header
      %s17 = sphi 0, %s21
      %p18 = scmp.ge.s32.totalorder %s17, 4
      %s25 = sphi 0, %s25
      %s27 = sphi 0, %s25
      %s28 = sphi 0, %s27
      %s42 = sphi 0, %s28
      %s48 = sphi 0, %s50
      %s51 = sphi 0, %s48
      %s52 = sphi 0, %s51
      %s68 = sphi 0, %s52
      %s76 = sphi 0, %s78
      %s79 = sphi 0, %s76
      %s80 = sphi 0, %s79
      %s96 = sphi 0, %s80
      %s100 = sphi 0, %s100
      %s102 = sphi 0, %s100
      %s103 = sphi 0, %s102
      %s117 = sphi 0, %s103
      %s121 = sphi 0, %s121
      %s123 = sphi 0, %s121
      %s124 = sphi 0, %s123
      %s138 = sphi 0, %s124
      %s144 = sphi 0, %s146
      %s147 = sphi 0, %s144
      %s148 = sphi 0, %s147
      %s164 = sphi 0, %s148
      %s172 = sphi 0, %s174
      %s175 = sphi 0, %s172
      %s176 = sphi 0, %s175
      %s192 = sphi 0, %s176
      %s196 = sphi 0, %s196
      %s198 = sphi 0, %s196
      %s199 = sphi 0, %s198
      %s213 = sphi 0, %s199
      %s217 = sphi 0, %s217
      %s219 = sphi 0, %s217
      %s220 = sphi 0, %s219
      %s234 = sphi 0, %s220
    $region4: #{vlstm_forward.2} parent=1 // loop_header_branch
      %20 = sbr.rel (%p18) target = $region8
    $region5: #{vlstm_forward.2} parent=1 // loop_body
      %s22 = ssub.s32 %s17, 1
      %s23 = ssub.s32 %s17, 2
      %s24 = sadd.s32 %s17, 1
      %s26 = sadd.s32 %s25, 1
      %p29 = scmp.eq.s32.totalorder %s17, 1
      %p30 = scmp.ne.s32.totalorder %s25, %s27
      %p31 = scmp.eq.s32.totalorder %s17, 0
      %p32 = por %p30, %p31
      %p33 = scmp.ne.s32.totalorder %s25, %s27
      %p34 = scmp.eq.s32.totalorder %s22, 1
      %p35 = por %p33, %p34
      %p36 = scmp.ne.s32.totalorder %s27, %s28
      %p37 = scmp.eq.s32.totalorder %s22, 0
      %p38 = por %p36, %p37
      %p39 = scmp.ne.s32.totalorder %s27, %s28
      %p40 = scmp.eq.s32.totalorder %s23, 1
      %p41 = por %p39, %p40
      %p43 = scmp.ne.s32.totalorder %s28, %s42
      %p44 = scmp.eq.s32.totalorder %s23, 0
      %p45 = por %p43, %p44
      %s46 = ssub.s32 %s17, %s24
      %p47 = scmp.eq.s32.totalorder %s46, 0
      %s49 = sadd.s32 %s48, 1
      %s50 = scalar_select %p47, %s48, %s49
      %p53 = pneg %p47
      %p54 = scmp.eq.s32.totalorder %s17, 1
      %p55 = por %p53, %p54
      %p56 = scmp.ne.s32.totalorder %s48, %s51
      %p57 = scmp.eq.s32.totalorder %s17, 0
      %p58 = por %p56, %p57
      %p59 = scmp.ne.s32.totalorder %s48, %s51
      %p60 = scmp.eq.s32.totalorder %s22, 1
      %p61 = por %p59, %p60
      %p62 = scmp.ne.s32.totalorder %s51, %s52
      %p63 = scmp.eq.s32.totalorder %s22, 0
      %p64 = por %p62, %p63
      %p65 = scmp.ne.s32.totalorder %s51, %s52
      %p66 = scmp.eq.s32.totalorder %s23, 1
      %p67 = por %p65, %p66
      %p69 = scmp.ne.s32.totalorder %s52, %s68
      %p70 = scmp.eq.s32.totalorder %s23, 0
      %p71 = por %p69, %p70
      %s72 = ssub.s32 1, %s17
      %s73 = ssub.s32 1, %s24
      %s74 = ssub.s32 %s72, %s73
      %p75 = scmp.eq.s32.totalorder %s74, 0
      %s77 = sadd.s32 %s76, 1
      %s78 = scalar_select %p75, %s76, %s77
      %p81 = pneg %p75
      %p82 = scmp.eq.s32.totalorder %s17, 1
      %p83 = por %p81, %p82
      %p84 = scmp.ne.s32.totalorder %s76, %s79
      %p85 = scmp.eq.s32.totalorder %s17, 0
      %p86 = por %p84, %p85
      %p87 = scmp.ne.s32.totalorder %s76, %s79
      %p88 = scmp.eq.s32.totalorder %s22, 1
      %p89 = por %p87, %p88
      %p90 = scmp.ne.s32.totalorder %s79, %s80
      %p91 = scmp.eq.s32.totalorder %s22, 0
      %p92 = por %p90, %p91
      %p93 = scmp.ne.s32.totalorder %s79, %s80
      %p94 = scmp.eq.s32.totalorder %s23, 1
      %p95 = por %p93, %p94
      %p97 = scmp.ne.s32.totalorder %s80, %s96
      %p98 = scmp.eq.s32.totalorder %s23, 0
      %p99 = por %p97, %p98
      %s101 = sadd.s32 %s100, 1
      %p104 = scmp.eq.s32.totalorder %s17, 1
      %p105 = scmp.ne.s32.totalorder %s100, %s102
      %p106 = scmp.eq.s32.totalorder %s17, 0
      %p107 = por %p105, %p106
      %p108 = scmp.ne.s32.totalorder %s100, %s102
      %p109 = scmp.eq.s32.totalorder %s22, 1
      %p110 = por %p108, %p109
      %p111 = scmp.ne.s32.totalorder %s102, %s103
      %p112 = scmp.eq.s32.totalorder %s22, 0
      %p113 = por %p111, %p112
      %p114 = scmp.ne.s32.totalorder %s102, %s103
      %p115 = scmp.eq.s32.totalorder %s23, 1
      %p116 = por %p114, %p115
      %p118 = scmp.ne.s32.totalorder %s103, %s117
      %p119 = scmp.eq.s32.totalorder %s23, 0
      %p120 = por %p118, %p119
      %s122 = sadd.s32 %s121, 1
      %p125 = scmp.eq.s32.totalorder %s17, 1
      %p126 = scmp.ne.s32.totalorder %s121, %s123
      %p127 = scmp.eq.s32.totalorder %s17, 0
      %p128 = por %p126, %p127
      %p129 = scmp.ne.s32.totalorder %s121, %s123
      %p130 = scmp.eq.s32.totalorder %s22, 1
      %p131 = por %p129, %p130
      %p132 = scmp.ne.s32.totalorder %s123, %s124
      %p133 = scmp.eq.s32.totalorder %s22, 0
      %p134 = por %p132, %p133
      %p135 = scmp.ne.s32.totalorder %s123, %s124
      %p136 = scmp.eq.s32.totalorder %s23, 1
      %p137 = por %p135, %p136
      %p139 = scmp.ne.s32.totalorder %s124, %s138
      %p140 = scmp.eq.s32.totalorder %s23, 0
      %p141 = por %p139, %p140
      %s142 = ssub.s32 %s17, %s24
      %p143 = scmp.eq.s32.totalorder %s142, 0
      %s145 = sadd.s32 %s144, 1
      %s146 = scalar_select %p143, %s144, %s145
      %p149 = pneg %p143
      %p150 = scmp.eq.s32.totalorder %s17, 1
      %p151 = por %p149, %p150
      %p152 = scmp.ne.s32.totalorder %s144, %s147
      %p153 = scmp.eq.s32.totalorder %s17, 0
      %p154 = por %p152, %p153
      %p155 = scmp.ne.s32.totalorder %s144, %s147
      %p156 = scmp.eq.s32.totalorder %s22, 1
      %p157 = por %p155, %p156
      %p158 = scmp.ne.s32.totalorder %s147, %s148
      %p159 = scmp.eq.s32.totalorder %s22, 0
      %p160 = por %p158, %p159
      %p161 = scmp.ne.s32.totalorder %s147, %s148
      %p162 = scmp.eq.s32.totalorder %s23, 1
      %p163 = por %p161, %p162
      %p165 = scmp.ne.s32.totalorder %s148, %s164
      %p166 = scmp.eq.s32.totalorder %s23, 0
      %p167 = por %p165, %p166
      %s168 = ssub.s32 1, %s17
      %s169 = ssub.s32 1, %s24
      %s170 = ssub.s32 %s168, %s169
      %p171 = scmp.eq.s32.totalorder %s170, 0
      %s173 = sadd.s32 %s172, 1
      %s174 = scalar_select %p171, %s172, %s173
      %p177 = pneg %p171
      %p178 = scmp.eq.s32.totalorder %s17, 1
      %p179 = por %p177, %p178
      %p180 = scmp.ne.s32.totalorder %s172, %s175
      %p181 = scmp.eq.s32.totalorder %s17, 0
      %p182 = por %p180, %p181
      %p183 = scmp.ne.s32.totalorder %s172, %s175
      %p184 = scmp.eq.s32.totalorder %s22, 1
      %p185 = por %p183, %p184
      %p186 = scmp.ne.s32.totalorder %s175, %s176
      %p187 = scmp.eq.s32.totalorder %s22, 0
      %p188 = por %p186, %p187
      %p189 = scmp.ne.s32.totalorder %s175, %s176
      %p190 = scmp.eq.s32.totalorder %s23, 1
      %p191 = por %p189, %p190
      %p193 = scmp.ne.s32.totalorder %s176, %s192
      %p194 = scmp.eq.s32.totalorder %s23, 0
      %p195 = por %p193, %p194
      %s197 = sadd.s32 %s196, 1
      %p200 = scmp.eq.s32.totalorder %s17, 1
      %p201 = scmp.ne.s32.totalorder %s196, %s198
      %p202 = scmp.eq.s32.totalorder %s17, 0
      %p203 = por %p201, %p202
      %p204 = scmp.ne.s32.totalorder %s196, %s198
      %p205 = scmp.eq.s32.totalorder %s22, 1
      %p206 = por %p204, %p205
      %p207 = scmp.ne.s32.totalorder %s198, %s199
      %p208 = scmp.eq.s32.totalorder %s22, 0
      %p209 = por %p207, %p208
      %p210 = scmp.ne.s32.totalorder %s198, %s199
      %p211 = scmp.eq.s32.totalorder %s23, 1
      %p212 = por %p210, %p211
      %p214 = scmp.ne.s32.totalorder %s199, %s213
      %p215 = scmp.eq.s32.totalorder %s23, 0
      %p216 = por %p214, %p215
      %s218 = sadd.s32 %s217, 1
      %p221 = scmp.eq.s32.totalorder %s17, 1
      %p222 = scmp.ne.s32.totalorder %s217, %s219
      %p223 = scmp.eq.s32.totalorder %s17, 0
      %p224 = por %p222, %p223
      %p225 = scmp.ne.s32.totalorder %s217, %s219
      %p226 = scmp.eq.s32.totalorder %s22, 1
      %p227 = por %p225, %p226
      %p228 = scmp.ne.s32.totalorder %s219, %s220
      %p229 = scmp.eq.s32.totalorder %s22, 0
      %p230 = por %p228, %p229
      %p231 = scmp.ne.s32.totalorder %s219, %s220
      %p232 = scmp.eq.s32.totalorder %s23, 1
      %p233 = por %p231, %p232
      %p235 = scmp.ne.s32.totalorder %s220, %s234
      %p236 = scmp.eq.s32.totalorder %s23, 0
      %p237 = por %p235, %p236
      %p238 = scmp.le.s32.totalorder 1, %s17
      %p239 = scmp.lt.s32.totalorder %s17, 3
      %p240 = pnand %p238, %p239
      %p241 = pneg %p240
      // Predicated region
      $region9: #{vlstm_forward.2} parent=5 // pred_check
        _
      $region10: #{vlstm_forward.2} parent=5 // pred_check_branch
        %243 = sbr.rel (%p240) target = $region12
      $region11: #{vlstm_forward.2} parent=5 // pred_region
        %s244 = ssub.s32 %s17, 1
        // Predicated region
        $region13: #{vlstm_forward.2} parent=11 // pred_check
          %p245 = pneg %p38
        $region14: #{vlstm_forward.2} parent=11 // pred_check_branch
          %247 = sbr.rel (%p245) target = $region16
        $region15: #{vlstm_forward.2} parent=11 // pred_region
          _
        $region16: #{vlstm_forward.2} parent=11 // pred_fallthru
          _
        // Predicated region
        $region17: #{vlstm_forward.2} parent=11 // pred_check
          %p248 = pneg %p113
        $region18: #{vlstm_forward.2} parent=11 // pred_check_branch
          %250 = sbr.rel (%p248) target = $region20
        $region19: #{vlstm_forward.2} parent=11 // pred_region
          _
        $region20: #{vlstm_forward.2} parent=11 // pred_fallthru
          _
        // Predicated region
        $region21: #{vlstm_forward.2} parent=11 // pred_check
          %p251 = pneg %p134
        $region22: #{vlstm_forward.2} parent=11 // pred_check_branch
          %253 = sbr.rel (%p251) target = $region24
        $region23: #{vlstm_forward.2} parent=11 // pred_region
          _
        $region24: #{vlstm_forward.2} parent=11 // pred_fallthru
          _
      $region12: #{vlstm_forward.2} parent=5 // pred_fallthru
        _
      %p254 = scmp.lt.s32.totalorder %s17, 2
      // Predicated region
      $region25: #{vlstm_forward.2} parent=5 // pred_check
        %p255 = pneg %p254
      $region26: #{vlstm_forward.2} parent=5 // pred_check_branch
        %257 = sbr.rel (%p255) target = $region28
      $region27: #{vlstm_forward.2} parent=5 // pred_region
        // Predicated region
        $region29: #{vlstm_forward.2} parent=27 // pred_check
          %p258 = pneg %p58
        $region30: #{vlstm_forward.2} parent=27 // pred_check_branch
          %260 = sbr.rel (%p258) target = $region32
        $region31: #{vlstm_forward.2} parent=27 // pred_region
          %s261 = smul.u32 8, %s17
          %p262 = scmp.lt.s32.totalorder %s261, 15
          %s263 = scalar_select %p262, %s261, 15
          %s264 = smul.addr %s263, 8
          %s265 = scalar_lea.vmem %s1, %s264
          %s266 = smul.u32 8, %s17
        $region32: #{vlstm_forward.2} parent=27 // pred_fallthru
          _
        // Predicated region
        $region33: #{vlstm_forward.2} parent=27 // pred_check
          %p267 = pneg %p86
        $region34: #{vlstm_forward.2} parent=27 // pred_check_branch
          %269 = sbr.rel (%p267) target = $region36
        $region35: #{vlstm_forward.2} parent=27 // pred_region
          %s270 = ssub.s32 1, %s17
          %s271 = smul.u32 8, %s270
          %p272 = scmp.lt.s32.totalorder %s271, 15
          %s273 = scalar_select %p272, %s271, 15
          %s274 = smul.addr %s273, 8
          %s275 = scalar_lea.vmem %s2, %s274
          %s276 = ssub.s32 1, %s17
          %s277 = smul.u32 8, %s276
        $region36: #{vlstm_forward.2} parent=27 // pred_fallthru
          _
      $region28: #{vlstm_forward.2} parent=5 // pred_fallthru
        _
      %p278 = scmp.le.s32.totalorder 1, %s17
      %p279 = scmp.lt.s32.totalorder %s17, 3
      %p280 = pnand %p278, %p279
      %p281 = pneg %p280
      // Predicated region
      $region37: #{vlstm_forward.2} parent=5 // pred_check
        _
      $region38: #{vlstm_forward.2} parent=5 // pred_check_branch
        %283 = sbr.rel (%p280) target = $region40
      $region39: #{vlstm_forward.2} parent=5 // pred_region
        %s284 = ssub.s32 %s17, 1
        %p285 = pneg %p38
        %p286 = pneg %p35
        %s287 = smul.u32 8, %s22
        %p288 = scmp.lt.s32.totalorder %s287, 15
        %s289 = scalar_select %p288, %s287, 15
        %s290 = smul.addr %s289, 8
        %s291 = scalar_lea.vmem %s1, %s290
        %p292 = pneg %p64
        %p293 = pneg %p61
        %s294 = ssub.s32 1, %s22
        %s295 = smul.u32 8, %s294
        %p296 = scmp.lt.s32.totalorder %s295, 15
        %s297 = scalar_select %p296, %s295, 15
        %s298 = smul.addr %s297, 8
        %s299 = scalar_lea.vmem %s2, %s298
        %p300 = pneg %p92
        %p301 = pneg %p89
        %p302 = pneg %p113
        %p303 = pneg %p110
        %p304 = pneg %p134
        %p305 = pneg %p131
        %p306 = pneg %p160
        %p307 = pneg %p157
        %s308 = smul.u32 8, %s22
        %p309 = scmp.lt.s32.totalorder %s308, 15
        %s310 = scalar_select %p309, %s308, 15
        %s311 = smul.addr %s310, 8
        %s312 = scalar_lea.vmem %s5, %s311
        %p313 = pneg %p188
        %p314 = pneg %p185
        %s315 = ssub.s32 1, %s22
        %s316 = smul.u32 8, %s315
        %p317 = scmp.lt.s32.totalorder %s316, 15
        %s318 = scalar_select %p317, %s316, 15
        %s319 = smul.addr %s318, 8
        %s320 = scalar_lea.vmem %s6, %s319
        %p321 = pneg %p209
        %p322 = pneg %p206
        %p323 = pneg %p230
        %p324 = pneg %p227
        %s325 = smul.u32 8, %s22
        %p326 = scmp.lt.s32.totalorder %s325, 15
        %s327 = scalar_select %p326, %s325, 15
        %s328 = smul.addr %s327, 8
        %s329 = scalar_lea.vmem %s1, %s328
        %s330 = smul.u32 8, %s22
        %s331 = ssub.s32 1, %s22
        %s332 = smul.u32 8, %s331
        %p333 = scmp.lt.s32.totalorder %s332, 15
        %s334 = scalar_select %p333, %s332, 15
        %s335 = smul.addr %s334, 8
        %s336 = scalar_lea.vmem %s2, %s335
        %s337 = ssub.s32 1, %s22
        %s338 = smul.u32 8, %s337
        %s339 = smul.u32 8, %s22
        %p340 = scmp.lt.s32.totalorder %s339, 15
        %s341 = scalar_select %p340, %s339, 15
        %s342 = smul.addr %s341, 8
        %s343 = scalar_lea.vmem %s5, %s342
        %s344 = smul.u32 8, %s22
        %s345 = ssub.s32 1, %s22
        %s346 = smul.u32 8, %s345
        %p347 = scmp.lt.s32.totalorder %s346, 15
        %s348 = scalar_select %p347, %s346, 15
        %s349 = smul.addr %s348, 8
        %s350 = scalar_lea.vmem %s6, %s349
        %s351 = ssub.s32 1, %s22
        %s352 = smul.u32 8, %s351
        %p354 = scmp.eq.s32.totalorder %s22, 0
        // Predicated region
        $region41: #{vlstm_forward.2} parent=39 // pred_check
          %p355 = pneg %p354
        $region42: #{vlstm_forward.2} parent=39 // pred_check_branch
          %357 = sbr.rel (%p355) target = $region44
        $region43: #{vlstm_forward.2} parent=39 // pred_region
          %vm358 = vcmask 261120
          %359 = vst.msk [vmem:[#allocation2] sm:$0xff] %vm358, 0.0
          %360 = vst.msk [vmem:[#allocation3] sm:$0xff] %vm358, 0.0
          %361 = vst.msk [vmem:[#allocation4] sm:$0xff] %vm358, 0.0
          %362 = vst.msk [vmem:[#allocation5] sm:$0xff] %vm358, 0.0
        $region44: #{vlstm_forward.2} parent=39 // pred_fallthru
          _
        %v363 = vld [vmem:[%s0] sm:$0xff]
        %v364 = vld [vmem:[%s3] sm:$0xf]
        %v365 = vld [vmem:[%s3 + $0x4] sm:$0xf]
        %v366 = vld [vmem:[%s3 + $0x8] sm:$0xf]
        %v367 = vld [vmem:[%s3 + $0xc] sm:$0xf]
        %v368 = vld [vmem:[%s4] sm:$0xf]
        %v369 = vld [vmem:[%s4 + $0x4] sm:$0xf]
        %v370 = vld [vmem:[%s4 + $0x8] sm:$0xf]
        %v371 = vld [vmem:[%s4 + $0xc] sm:$0xf]
        %s372 = smul.u32 %s22, 8
        %s373 = ssub.s32 1, %s22
        %s374 = smul.u32 %s373, 8
        %v375 = vld [vmem:[#allocation2] sm:$0xff]
        %v376 = vld [vmem:[#allocation3] sm:$0xff]
        %v377 = vld [vmem:[#allocation4] sm:$0xff]
        %v378 = vld [vmem:[#allocation5] sm:$0xff]
        loop: start=0, step=1, limit=4
        $region45: #{vlstm_forward.2} parent=39 // loop_pre_header
          _
        $region46: #{vlstm_forward.2} parent=39 // loop_header
          %s380 = sphi 0, %s384
          %p381 = scmp.ge.s32.totalorder %s380, 4
          %v385 = vphi %v375, %v696
          %v386 = vphi %v376, %v794
          %v387 = vphi %v377, %v788
          %v388 = vphi %v378, %v798
        $region47: #{vlstm_forward.2} parent=39 // loop_header_branch
          %383 = sbr.rel (%p381) target = $region51
        $region48: #{vlstm_forward.2} parent=39 // loop_body
          %s389 = smul.u32 %s380, 2
          %s390 = smul.u32 %s389, 8
          %s391 = scalar_lea.vmem %s329, %s390
          %v392 = vld [vmem:[%s391] sm:$0xff]
          %v393 = vpack.c.bf16 %v385, %v385
          %v398 = vunpack.c.l.b16 %v364
          %v399 = vunpack.c.l.b16 %v365
          %v400 = vunpack.c.l.b16 %v366
          %v401 = vunpack.c.l.b16 %v367
          %v402 = vpack.c.b16 %v399, %v398
          %v403 = vpack.c.b16 %v401, %v400
          %vm406 = vcmask 261120
          %v408 = vsel %vm406, %v393, 0
          %410 = vmatprep.subr.bf16.mxu0 0
          %411 = vmatpush1.bf16.msra.mxu0 0
          %412 = vmatprep.subr.bf16.mxu0 0
          %413 = vmatpush1.bf16.msra.mxu0 0
          %414 = vmatprep.subr.bf16.mxu0 0
          %415 = vmatpush1.bf16.msra.mxu0 0
          %416 = vmatprep.subr.bf16.mxu0 0
          %417 = vmatpush1.bf16.msra.mxu0 0
          %418 = vmatprep.subr.bf16.mxu0 0
          %419 = vmatpush1.bf16.msra.mxu0 0
          %420 = vmatprep.subr.bf16.mxu0 0
          %421 = vmatpush1.bf16.msra.mxu0 0
          %422 = vmatprep.subr.bf16.mxu0 0
          %423 = vmatpush1.bf16.msra.mxu0 %v403
          %424 = vmatprep.subr.bf16.mxu0 0
          %425 = vmatpush1.bf16.msra.mxu0 %v402
          %426 = vmatprep.subr.bf16.mxu0 0
          %427 = vmatpush2.bf16.msra.mxu0 0
          %428 = vmatprep.subr.bf16.mxu0 0
          %429 = vmatpush2.bf16.msra.mxu0 0
          %430 = vmatprep.subr.bf16.mxu0 0
          %431 = vmatpush2.bf16.msra.mxu0 0
          %432 = vmatprep.subr.bf16.mxu0 0
          %433 = vmatpush2.bf16.msra.mxu0 0
          %434 = vmatprep.subr.bf16.mxu0 0
          %435 = vmatpush2.bf16.msra.mxu0 0
          %436 = vmatprep.subr.bf16.mxu0 0
          %437 = vmatpush2.bf16.msra.mxu0 0
          %438 = vmatprep.subr.bf16.mxu0 0
          %439 = vmatpush2.bf16.msra.mxu0 0
          %440 = vmatprep.subr.bf16.mxu0 0
          %441 = vmatpush2.bf16.msra.mxu0 0
          %442 = vmatprep.mubr.bf16.mxu0 0
          %443 = vmatmul.mubr.bf16.gmra.mxu0 %v408
          %v444 = vpop.f32.mrf.mxu0
          %v445 = vadd.f32 0.0, %v444
          %v446 = vpop.f32.mrf.mxu0
          %v447 = vpop.f32.mrf.mxu0
          %v448 = vpop.f32.mrf.mxu0
          %449 = vdwg.mxu0
          %v450 = vadd.f32 %v392, %v445
          %v451 = vxor.u32 %v450, 2147483648
          %v452 = vmul.f32 %v451, 1.442695
          %v453 = vpow.pop %v452
          %v454 = vadd.f32 %v453, 1.0
          %v455 = vrcp.pop %v454
          %v456 = vmul.f32 1.0, %v455
          %v457 = vtanh.pop %v450
          %459 = vrot.lane.b32.xlu0 %v386, 32
          %v460 = vpop.permute.xlu0 %459
          %v462 = vmul.f32 %v456, %v460
          %464 = vrot.lane.b32.xlu0 %v457, 64
          %v465 = vpop.permute.xlu0 %464
          %v467 = vmul.f32 %v456, %v465
          %469 = vrot.lane.b32.xlu0 %v467, 32
          %v470 = vpop.permute.xlu0 %469
          %v472 = vadd.f32 %v462, %v470
          %v473 = vtanh.pop %v472
          %475 = vrot.lane.b32.xlu0 %v473, 64
          %v476 = vpop.permute.xlu0 %475
          %v478 = vmul.f32 %v456, %v476
          %s479 = sadd.s32 %s372, %s389
          %v480 = vstv %s479
          %vm481 = vcmp.lt.s32.totalorder %v480, %v363
          %v482 = vsel %vm481, 1, 0
          %483 = vset.pattern.permute.xlu0 0
          %484 = vperm.xlu0 %483, %v482
          %v485 = vpop.permute.xlu0 %484
          %vm486 = vcmp.eq.s32.totalorder %v485, 1
          %488 = vrot.lane.b32.xlu0 %v385, 96
          %v489 = vpop.permute.xlu0 %488
          %v491 = vsel %vm486, %v478, %v489
          %v492 = vsel %vm486, %v472, %v460
          %494 = vrot.lane.b32.xlu0 %v491, 32
          %v495 = vpop.permute.xlu0 %494
          %s497 = scalar_lea.vmem %s343, %s390
          %498 = vst.msk [vmem:[%s497] sm:$0xff] %vm406, %v495
          %s499 = ssub.s32 7, %s389
          %s500 = smul.u32 %s499, 8
          %s501 = scalar_lea.vmem %s336, %s500
          %v502 = vld [vmem:[%s501] sm:$0xff]
          %v503 = vpack.c.bf16 %v387, %v387
          %v508 = vunpack.c.l.b16 %v368
          %v509 = vunpack.c.l.b16 %v369
          %v510 = vunpack.c.l.b16 %v370
          %v511 = vunpack.c.l.b16 %v371
          %v512 = vpack.c.b16 %v509, %v508
          %v513 = vpack.c.b16 %v511, %v510
          %v517 = vsel %vm406, %v503, 0
          %519 = vmatprep.subr.bf16.mxu0 0
          %520 = vmatpush1.bf16.msra.mxu0 0
          %521 = vmatprep.subr.bf16.mxu0 0
          %522 = vmatpush1.bf16.msra.mxu0 0
          %523 = vmatprep.subr.bf16.mxu0 0
          %524 = vmatpush1.bf16.msra.mxu0 0
          %525 = vmatprep.subr.bf16.mxu0 0
          %526 = vmatpush1.bf16.msra.mxu0 0
          %527 = vmatprep.subr.bf16.mxu0 0
          %528 = vmatpush1.bf16.msra.mxu0 0
          %529 = vmatprep.subr.bf16.mxu0 0
          %530 = vmatpush1.bf16.msra.mxu0 0
          %531 = vmatprep.subr.bf16.mxu0 0
          %532 = vmatpush1.bf16.msra.mxu0 %v513
          %533 = vmatprep.subr.bf16.mxu0 0
          %534 = vmatpush1.bf16.msra.mxu0 %v512
          %535 = vmatprep.subr.bf16.mxu0 0
          %536 = vmatpush2.bf16.msra.mxu0 0
          %537 = vmatprep.subr.bf16.mxu0 0
          %538 = vmatpush2.bf16.msra.mxu0 0
          %539 = vmatprep.subr.bf16.mxu0 0
          %540 = vmatpush2.bf16.msra.mxu0 0
          %541 = vmatprep.subr.bf16.mxu0 0
          %542 = vmatpush2.bf16.msra.mxu0 0
          %543 = vmatprep.subr.bf16.mxu0 0
          %544 = vmatpush2.bf16.msra.mxu0 0
          %545 = vmatprep.subr.bf16.mxu0 0
          %546 = vmatpush2.bf16.msra.mxu0 0
          %547 = vmatprep.subr.bf16.mxu0 0
          %548 = vmatpush2.bf16.msra.mxu0 0
          %549 = vmatprep.subr.bf16.mxu0 0
          %550 = vmatpush2.bf16.msra.mxu0 0
          %551 = vmatprep.mubr.bf16.mxu0 0
          %552 = vmatmul.mubr.bf16.gmra.mxu0 %v517
          %v553 = vpop.f32.mrf.mxu0
          %v554 = vadd.f32 0.0, %v553
          %v555 = vpop.f32.mrf.mxu0
          %v556 = vpop.f32.mrf.mxu0
          %v557 = vpop.f32.mrf.mxu0
          %558 = vdwg.mxu0
          %v559 = vadd.f32 %v502, %v554
          %v560 = vxor.u32 %v559, 2147483648
          %v561 = vmul.f32 %v560, 1.442695
          %v562 = vpow.pop %v561
          %v563 = vadd.f32 %v562, 1.0
          %v564 = vrcp.pop %v563
          %v565 = vmul.f32 1.0, %v564
          %v566 = vtanh.pop %v559
          %568 = vrot.lane.b32.xlu0 %v388, 32
          %v569 = vpop.permute.xlu0 %568
          %v571 = vmul.f32 %v565, %v569
          %573 = vrot.lane.b32.xlu0 %v566, 64
          %v574 = vpop.permute.xlu0 %573
          %v576 = vmul.f32 %v565, %v574
          %578 = vrot.lane.b32.xlu0 %v576, 32
          %v579 = vpop.permute.xlu0 %578
          %v581 = vadd.f32 %v571, %v579
          %v582 = vtanh.pop %v581
          %584 = vrot.lane.b32.xlu0 %v582, 64
          %v585 = vpop.permute.xlu0 %584
          %v587 = vmul.f32 %v565, %v585
          %s588 = sadd.s32 %s374, %s499
          %v589 = vstv %s588
          %vm590 = vcmp.lt.s32.totalorder %v589, %v363
          %v591 = vsel %vm590, 1, 0
          %592 = vset.pattern.permute.xlu0 0
          %593 = vperm.xlu0 %592, %v591
          %v594 = vpop.permute.xlu0 %593
          %vm595 = vcmp.eq.s32.totalorder %v594, 1
          %597 = vrot.lane.b32.xlu0 %v387, 96
          %v598 = vpop.permute.xlu0 %597
          %v600 = vsel %vm595, %v587, %v598
          %v601 = vsel %vm595, %v581, %v569
          %603 = vrot.lane.b32.xlu0 %v600, 32
          %v604 = vpop.permute.xlu0 %603
          %s606 = scalar_lea.vmem %s350, %s500
          %607 = vst.msk [vmem:[%s606] sm:$0xff] %vm406, %v604
          %s608 = sadd.s32 %s389, 1
          %s609 = smul.u32 %s608, 8
          %s610 = scalar_lea.vmem %s329, %s609
          %v611 = vld [vmem:[%s610] sm:$0xff]
          %v612 = vpack.c.bf16 %v491, %v491
          %614 = vrot.lane.b32.xlu0 %v612, 32
          %v615 = vpop.permute.xlu0 %614
          %v617 = vsel %vm406, %v615, 0
          %619 = vmatprep.subr.bf16.mxu0 0
          %620 = vmatpush1.bf16.msra.mxu0 0
          %621 = vmatprep.subr.bf16.mxu0 0
          %622 = vmatpush1.bf16.msra.mxu0 0
          %623 = vmatprep.subr.bf16.mxu0 0
          %624 = vmatpush1.bf16.msra.mxu0 0
          %625 = vmatprep.subr.bf16.mxu0 0
          %626 = vmatpush1.bf16.msra.mxu0 0
          %627 = vmatprep.subr.bf16.mxu0 0
          %628 = vmatpush1.bf16.msra.mxu0 0
          %629 = vmatprep.subr.bf16.mxu0 0
          %630 = vmatpush1.bf16.msra.mxu0 0
          %631 = vmatprep.subr.bf16.mxu0 0
          %632 = vmatpush1.bf16.msra.mxu0 %v403
          %633 = vmatprep.subr.bf16.mxu0 0
          %634 = vmatpush1.bf16.msra.mxu0 %v402
          %635 = vmatprep.subr.bf16.mxu0 0
          %636 = vmatpush2.bf16.msra.mxu0 0
          %637 = vmatprep.subr.bf16.mxu0 0
          %638 = vmatpush2.bf16.msra.mxu0 0
          %639 = vmatprep.subr.bf16.mxu0 0
          %640 = vmatpush2.bf16.msra.mxu0 0
          %641 = vmatprep.subr.bf16.mxu0 0
          %642 = vmatpush2.bf16.msra.mxu0 0
          %643 = vmatprep.subr.bf16.mxu0 0
          %644 = vmatpush2.bf16.msra.mxu0 0
          %645 = vmatprep.subr.bf16.mxu0 0
          %646 = vmatpush2.bf16.msra.mxu0 0
          %647 = vmatprep.subr.bf16.mxu0 0
          %648 = vmatpush2.bf16.msra.mxu0 0
          %649 = vmatprep.subr.bf16.mxu0 0
          %650 = vmatpush2.bf16.msra.mxu0 0
          %651 = vmatprep.mubr.bf16.mxu0 0
          %652 = vmatmul.mubr.bf16.gmra.mxu0 %v617
          %v653 = vpop.f32.mrf.mxu0
          %v654 = vadd.f32 0.0, %v653
          %v655 = vpop.f32.mrf.mxu0
          %v656 = vpop.f32.mrf.mxu0
          %v657 = vpop.f32.mrf.mxu0
          %658 = vdwg.mxu0
          %v659 = vadd.f32 %v611, %v654
          %v660 = vxor.u32 %v659, 2147483648
          %v661 = vmul.f32 %v660, 1.442695
          %v662 = vpow.pop %v661
          %v663 = vadd.f32 %v662, 1.0
          %v664 = vrcp.pop %v663
          %v665 = vmul.f32 1.0, %v664
          %v666 = vtanh.pop %v659
          %v667 = vmul.f32 %v665, %v492
          %669 = vrot.lane.b32.xlu0 %v666, 64
          %v670 = vpop.permute.xlu0 %669
          %v672 = vmul.f32 %v665, %v670
          %674 = vrot.lane.b32.xlu0 %v672, 32
          %v675 = vpop.permute.xlu0 %674
          %v677 = vadd.f32 %v667, %v675
          %v678 = vtanh.pop %v677
          %680 = vrot.lane.b32.xlu0 %v678, 64
          %v681 = vpop.permute.xlu0 %680
          %v683 = vmul.f32 %v665, %v681
          %s684 = sadd.s32 %s372, %s608
          %v685 = vstv %s684
          %vm686 = vcmp.lt.s32.totalorder %v685, %v363
          %v687 = vsel %vm686, 1, 0
          %688 = vset.pattern.permute.xlu0 0
          %689 = vperm.xlu0 %688, %v687
          %v690 = vpop.permute.xlu0 %689
          %vm691 = vcmp.eq.s32.totalorder %v690, 1
          %v692 = vsel %vm691, %v683, %v491
          %v693 = vsel %vm691, %v677, %v492
          %695 = vrot.lane.b32.xlu0 %v692, 32
          %v696 = vpop.permute.xlu0 %695
          %s698 = scalar_lea.vmem %s343, %s609
          %699 = vst.msk [vmem:[%s698] sm:$0xff] %vm406, %v696
          %s700 = ssub.s32 6, %s389
          %s701 = smul.u32 %s700, 8
          %s702 = scalar_lea.vmem %s336, %s701
          %v703 = vld [vmem:[%s702] sm:$0xff]
          %v704 = vpack.c.bf16 %v600, %v600
          %706 = vrot.lane.b32.xlu0 %v704, 32
          %v707 = vpop.permute.xlu0 %706
          %v709 = vsel %vm406, %v707, 0
          %711 = vmatprep.subr.bf16.mxu0 0
          %712 = vmatpush1.bf16.msra.mxu0 0
          %713 = vmatprep.subr.bf16.mxu0 0
          %714 = vmatpush1.bf16.msra.mxu0 0
          %715 = vmatprep.subr.bf16.mxu0 0
          %716 = vmatpush1.bf16.msra.mxu0 0
          %717 = vmatprep.subr.bf16.mxu0 0
          %718 = vmatpush1.bf16.msra.mxu0 0
          %719 = vmatprep.subr.bf16.mxu0 0
          %720 = vmatpush1.bf16.msra.mxu0 0
          %721 = vmatprep.subr.bf16.mxu0 0
          %722 = vmatpush1.bf16.msra.mxu0 0
          %723 = vmatprep.subr.bf16.mxu0 0
          %724 = vmatpush1.bf16.msra.mxu0 %v513
          %725 = vmatprep.subr.bf16.mxu0 0
          %726 = vmatpush1.bf16.msra.mxu0 %v512
          %727 = vmatprep.subr.bf16.mxu0 0
          %728 = vmatpush2.bf16.msra.mxu0 0
          %729 = vmatprep.subr.bf16.mxu0 0
          %730 = vmatpush2.bf16.msra.mxu0 0
          %731 = vmatprep.subr.bf16.mxu0 0
          %732 = vmatpush2.bf16.msra.mxu0 0
          %733 = vmatprep.subr.bf16.mxu0 0
          %734 = vmatpush2.bf16.msra.mxu0 0
          %735 = vmatprep.subr.bf16.mxu0 0
          %736 = vmatpush2.bf16.msra.mxu0 0
          %737 = vmatprep.subr.bf16.mxu0 0
          %738 = vmatpush2.bf16.msra.mxu0 0
          %739 = vmatprep.subr.bf16.mxu0 0
          %740 = vmatpush2.bf16.msra.mxu0 0
          %741 = vmatprep.subr.bf16.mxu0 0
          %742 = vmatpush2.bf16.msra.mxu0 0
          %743 = vmatprep.mubr.bf16.mxu0 0
          %744 = vmatmul.mubr.bf16.gmra.mxu0 %v709
          %v745 = vpop.f32.mrf.mxu0
          %v746 = vadd.f32 0.0, %v745
          %v747 = vpop.f32.mrf.mxu0
          %v748 = vpop.f32.mrf.mxu0
          %v749 = vpop.f32.mrf.mxu0
          %750 = vdwg.mxu0
          %v751 = vadd.f32 %v703, %v746
          %v752 = vxor.u32 %v751, 2147483648
          %v753 = vmul.f32 %v752, 1.442695
          %v754 = vpow.pop %v753
          %v755 = vadd.f32 %v754, 1.0
          %v756 = vrcp.pop %v755
          %v757 = vmul.f32 1.0, %v756
          %v758 = vtanh.pop %v751
          %v759 = vmul.f32 %v757, %v601
          %761 = vrot.lane.b32.xlu0 %v758, 64
          %v762 = vpop.permute.xlu0 %761
          %v764 = vmul.f32 %v757, %v762
          %766 = vrot.lane.b32.xlu0 %v764, 32
          %v767 = vpop.permute.xlu0 %766
          %v769 = vadd.f32 %v759, %v767
          %v770 = vtanh.pop %v769
          %772 = vrot.lane.b32.xlu0 %v770, 64
          %v773 = vpop.permute.xlu0 %772
          %v775 = vmul.f32 %v757, %v773
          %s776 = sadd.s32 %s374, %s700
          %v777 = vstv %s776
          %vm778 = vcmp.lt.s32.totalorder %v777, %v363
          %v779 = vsel %vm778, 1, 0
          %780 = vset.pattern.permute.xlu0 0
          %781 = vperm.xlu0 %780, %v779
          %v782 = vpop.permute.xlu0 %781
          %vm783 = vcmp.eq.s32.totalorder %v782, 1
          %v784 = vsel %vm783, %v775, %v600
          %v785 = vsel %vm783, %v769, %v601
          %787 = vrot.lane.b32.xlu0 %v784, 32
          %v788 = vpop.permute.xlu0 %787
          %s790 = scalar_lea.vmem %s350, %s701
          %791 = vst.msk [vmem:[%s790] sm:$0xff] %vm406, %v788
          %793 = vrot.lane.b32.xlu0 %v693, 96
          %v794 = vpop.permute.xlu0 %793
          %797 = vrot.lane.b32.xlu0 %v785, 96
          %v798 = vpop.permute.xlu0 %797
        $region49: #{vlstm_forward.2} parent=39 // loop_footer
          %s384 = sadd.s32 1, %s380
        $region50: #{vlstm_forward.2} parent=39 // loop_footer_branch
          %379 = sbr.rel target = $region46
        $region51: #{vlstm_forward.2} parent=39 // loop_exit
          _
        %vm800 = vcmask 261120
        %801 = vst.msk [vmem:[#allocation2] sm:$0xff] %vm800, %v385
        %802 = vst.msk [vmem:[#allocation3] sm:$0xff] %vm800, %v386
        %803 = vst.msk [vmem:[#allocation4] sm:$0xff] %vm800, %v387
        %804 = vst.msk [vmem:[#allocation5] sm:$0xff] %vm800, %v388
        %805 = vst.msk [vmem:[#allocation6] sm:$0xff] %vm800, %v385
        %806 = vst.msk [vmem:[#allocation8] sm:$0xff] %vm800, %v387
        %s807 = smul.u32 8, %s22
        %p808 = scmp.lt.s32.totalorder %s807, 15
        %s809 = scalar_select %p808, %s807, 15
        %s810 = smul.addr %s809, 8
        %s811 = scalar_lea.vmem %s5, %s810
        %s812 = ssub.s32 1, %s22
        %s813 = smul.u32 8, %s812
        %p814 = scmp.lt.s32.totalorder %s813, 15
        %s815 = scalar_select %p814, %s813, 15
        %s816 = smul.addr %s815, 8
        %s817 = scalar_lea.vmem %s6, %s816
        // Predicated region
        $region52: #{vlstm_forward.2} parent=39 // pred_check
          %p818 = pneg %p157
        $region53: #{vlstm_forward.2} parent=39 // pred_check_branch
          %820 = sbr.rel (%p818) target = $region55
        $region54: #{vlstm_forward.2} parent=39 // pred_region
          %s821 = smul.u32 8, %s22
        $region55: #{vlstm_forward.2} parent=39 // pred_fallthru
          _
        // Predicated region
        $region56: #{vlstm_forward.2} parent=39 // pred_check
          %p822 = pneg %p185
        $region57: #{vlstm_forward.2} parent=39 // pred_check_branch
          %824 = sbr.rel (%p822) target = $region59
        $region58: #{vlstm_forward.2} parent=39 // pred_region
          %s825 = ssub.s32 1, %s22
          %s826 = smul.u32 8, %s825
        $region59: #{vlstm_forward.2} parent=39 // pred_fallthru
          _
        // Predicated region
        $region60: #{vlstm_forward.2} parent=39 // pred_check
          %p827 = pneg %p206
        $region61: #{vlstm_forward.2} parent=39 // pred_check_branch
          %829 = sbr.rel (%p827) target = $region63
        $region62: #{vlstm_forward.2} parent=39 // pred_region
          %s831 = ssub.s32 128, 128
          %832 = vsyncadd [#allocation7], %s831
          %s834 = sshll.u32 [#allocation6], 4
          %s835 = int_to_ptr.vmem [resolvable:$true] %s834
          %837 = dma.vmem_to_hbm [thread:$0]  %s835, 128, %s7, [#allocation7]
        $region63: #{vlstm_forward.2} parent=39 // pred_fallthru
          _
        // Predicated region
        $region64: #{vlstm_forward.2} parent=39 // pred_check
          %p838 = pneg %p227
        $region65: #{vlstm_forward.2} parent=39 // pred_check_branch
          %840 = sbr.rel (%p838) target = $region67
        $region66: #{vlstm_forward.2} parent=39 // pred_region
          %s842 = ssub.s32 128, 128
          %843 = vsyncadd [#allocation9], %s842
          %s845 = sshll.u32 [#allocation8], 4
          %s846 = int_to_ptr.vmem [resolvable:$true] %s845
          %848 = dma.vmem_to_hbm [thread:$0]  %s846, 128, %s8, [#allocation9]
        $region67: #{vlstm_forward.2} parent=39 // pred_fallthru
          _
        // Predicated region
        $region68: #{vlstm_forward.2} parent=39 // pred_check
          %p849 = pneg %p206
        $region69: #{vlstm_forward.2} parent=39 // pred_check_branch
          %851 = sbr.rel (%p849) target = $region71
        $region70: #{vlstm_forward.2} parent=39 // pred_region
          %852 = dma.done [#allocation7], 128
        $region71: #{vlstm_forward.2} parent=39 // pred_fallthru
          _
        // Predicated region
        $region72: #{vlstm_forward.2} parent=39 // pred_check
          %p853 = pneg %p227
        $region73: #{vlstm_forward.2} parent=39 // pred_check_branch
          %855 = sbr.rel (%p853) target = $region75
        $region74: #{vlstm_forward.2} parent=39 // pred_region
          %856 = dma.done [#allocation9], 128
        $region75: #{vlstm_forward.2} parent=39 // pred_fallthru
          _
      $region40: #{vlstm_forward.2} parent=5 // pred_fallthru
        _
      %p857 = scmp.le.s32.totalorder 2, %s17
      // Predicated region
      $region76: #{vlstm_forward.2} parent=5 // pred_check
        %p858 = pneg %p857
      $region77: #{vlstm_forward.2} parent=5 // pred_check_branch
        %860 = sbr.rel (%p858) target = $region79
      $region78: #{vlstm_forward.2} parent=5 // pred_region
        %s861 = ssub.s32 %s17, 2
        // Predicated region
        $region80: #{vlstm_forward.2} parent=78 // pred_check
          %p862 = pneg %p163
        $region81: #{vlstm_forward.2} parent=78 // pred_check_branch
          %864 = sbr.rel (%p862) target = $region83
        $region82: #{vlstm_forward.2} parent=78 // pred_region
          %s865 = smul.u32 8, %s23
          %p866 = scmp.lt.s32.totalorder %s865, 15
          %s867 = scalar_select %p866, %s865, 15
          %s868 = smul.addr %s867, 8
          %s869 = scalar_lea.vmem %s5, %s868
        $region83: #{vlstm_forward.2} parent=78 // pred_fallthru
          _
        // Predicated region
        $region84: #{vlstm_forward.2} parent=78 // pred_check
          %p870 = pneg %p191
        $region85: #{vlstm_forward.2} parent=78 // pred_check_branch
          %872 = sbr.rel (%p870) target = $region87
        $region86: #{vlstm_forward.2} parent=78 // pred_region
          %s873 = ssub.s32 1, %s23
          %s874 = smul.u32 8, %s873
          %p875 = scmp.lt.s32.totalorder %s874, 15
          %s876 = scalar_select %p875, %s874, 15
          %s877 = smul.addr %s876, 8
          %s878 = scalar_lea.vmem %s6, %s877
        $region87: #{vlstm_forward.2} parent=78 // pred_fallthru
          _
      $region79: #{vlstm_forward.2} parent=5 // pred_fallthru
        _
    $region6: #{vlstm_forward.2} parent=1 // loop_footer
      %s21 = sadd.s32 1, %s17
    $region7: #{vlstm_forward.2} parent=1 // loop_footer_branch
      %16 = sbr.rel target = $region3
    $region8: #{vlstm_forward.2} parent=1 // loop_exit
      _
    %879 = vsyncpa [#allocation7], 1
    %s880 = scalar_lea.sflag [#allocation7], 1
    %881 = vsyncpa %s880, 1
    %882 = vsyncpa [#allocation9], 1

// kernel: vlstm_forward.3
$region0: #{vlstm_forward.3}
  #allocation0 [shape = 'u32[]', space=smem, size = 0x4, offset = 0x4, fixed_abs, tag = 'smem constant byte address 0x4 - core index']
  #allocation1 [shape = 'u32[144,128]{1,0:T(1,128)}', space=vmem, size = 0x12000, scoped, tag = 'internal scratch']
  #allocation2 [shape = 'f32[8,32]{1,0:T(8,128)}', space=vmem, size = 0x1000, scoped, tag = 'scratch operand']
  #allocation3 [shape = 'f32[8,32]{1,0:T(8,128)}', space=vmem, size = 0x1000, scoped, tag = 'scratch operand']
  #allocation4 [shape = 'f32[8,32]{1,0:T(8,128)}', space=vmem, size = 0x1000, scoped, tag = 'scratch operand']
  #allocation5 [shape = 'f32[8,32]{1,0:T(8,128)}', space=vmem, size = 0x1000, scoped, tag = 'scratch operand']
  %s0 = inlined_call_operand.vmem [shape: s32[8,1], index: 0, kind: input, shape index: {}]
  %s1 = inlined_call_operand.vmem [shape: f32[16,8,128], index: 1, kind: input, shape index: {}]
  %s2 = inlined_call_operand.vmem [shape: f32[16,8,128], index: 2, kind: input, shape index: {}]
  %s3 = inlined_call_operand.vmem [shape: bf16[32,128], index: 3, kind: input, shape index: {}]
  %s4 = inlined_call_operand.vmem [shape: bf16[32,128], index: 4, kind: input, shape index: {}]
  %s5 = inlined_call_operand.hbm [shape: f32[16,8,32], index: 5, kind: output, shape index: {0}]
  %s6 = inlined_call_operand.hbm [shape: f32[16,8,32], index: 6, kind: output, shape index: {1}]
  %s7 = inlined_call_operand.vmem [shape: f32[8,32], index: 7, kind: output, shape index: {2}]
  %s8 = inlined_call_operand.vmem [shape: f32[8,32], index: 8, kind: output, shape index: {3}]
  %9 = xla_tuple %s5, %s6, %s7, %s8
  %s10 = sld [smem:[#allocation0]]
  $region88: #{vlstm_forward.3} parent=0
    _
  %s12 = ssub.s32 1, %s10
  %s13 = scalar_select 0, %s12, %s10
  $region1: #{vlstm_forward.3} parent=0
    #allocation6 [shape = 'u8[65536]{0}', space=vmem, size = 0x10000, scoped, tag = 'output window, operand 0']
    #allocation7 [shape = 's32[2]{0}', space=sflag, size = 0x8, scoped, tag = 'scoped memory for vlstm_forward.3']
    #allocation8 [shape = 'u8[65536]{0}', space=vmem, size = 0x10000, scoped, tag = 'output window, operand 1']
    #allocation9 [shape = 's32[2]{0}', space=sflag, size = 0x8, scoped, tag = 'scoped memory for vlstm_forward.3']
    %14 = vsyncpa [#allocation7], 0
    %s15 = scalar_lea.sflag [#allocation7], 1
    %16 = vsyncpa %s15, 0
    %17 = vsyncpa [#allocation9], 0
    %s18 = scalar_lea.sflag [#allocation9], 1
    %19 = vsyncpa %s18, 0
    loop: start=0, step=1, limit=4
    $region2: #{vlstm_forward.3} parent=1 // loop_pre_header
      _
    $region3: #{vlstm_forward.3} parent=1 // loop_header
      %s21 = sphi 0, %s25
      %p22 = scmp.ge.s32.totalorder %s21, 4
      %s29 = sphi 0, %s29
      %s31 = sphi 0, %s29
      %s32 = sphi 0, %s31
      %s46 = sphi 0, %s32
      %s52 = sphi 0, %s54
      %s55 = sphi 0, %s52
      %s56 = sphi 0, %s55
      %s72 = sphi 0, %s56
      %s80 = sphi 0, %s82
      %s83 = sphi 0, %s80
      %s84 = sphi 0, %s83
      %s100 = sphi 0, %s84
      %s104 = sphi 0, %s104
      %s106 = sphi 0, %s104
      %s107 = sphi 0, %s106
      %s121 = sphi 0, %s107
      %s125 = sphi 0, %s125
      %s127 = sphi 0, %s125
      %s128 = sphi 0, %s127
      %s142 = sphi 0, %s128
      %s148 = sphi 0, %s150
      %s151 = sphi 0, %s148
      %s152 = sphi 0, %s151
      %s168 = sphi 0, %s152
      %s176 = sphi 0, %s178
      %s179 = sphi 0, %s176
      %s180 = sphi 0, %s179
      %s196 = sphi 0, %s180
      %s200 = sphi 0, %s200
      %s202 = sphi 0, %s200
      %s203 = sphi 0, %s202
      %s217 = sphi 0, %s203
      %s221 = sphi 0, %s221
      %s223 = sphi 0, %s221
      %s224 = sphi 0, %s223
      %s238 = sphi 0, %s224
    $region4: #{vlstm_forward.3} parent=1 // loop_header_branch
      %24 = sbr.rel (%p22) target = $region8
    $region5: #{vlstm_forward.3} parent=1 // loop_body
      %s26 = ssub.s32 %s21, 1
      %s27 = ssub.s32 %s21, 2
      %s28 = sadd.s32 %s21, 1
      %s30 = sadd.s32 %s29, 1
      %p33 = scmp.eq.s32.totalorder %s21, 1
      %p34 = scmp.ne.s32.totalorder %s29, %s31
      %p35 = scmp.eq.s32.totalorder %s21, 0
      %p36 = por %p34, %p35
      %p37 = scmp.ne.s32.totalorder %s29, %s31
      %p38 = scmp.eq.s32.totalorder %s26, 1
      %p39 = por %p37, %p38
      %p40 = scmp.ne.s32.totalorder %s31, %s32
      %p41 = scmp.eq.s32.totalorder %s26, 0
      %p42 = por %p40, %p41
      %p43 = scmp.ne.s32.totalorder %s31, %s32
      %p44 = scmp.eq.s32.totalorder %s27, 1
      %p45 = por %p43, %p44
      %p47 = scmp.ne.s32.totalorder %s32, %s46
      %p48 = scmp.eq.s32.totalorder %s27, 0
      %p49 = por %p47, %p48
      %s50 = ssub.s32 %s21, %s28
      %p51 = scmp.eq.s32.totalorder %s50, 0
      %s53 = sadd.s32 %s52, 1
      %s54 = scalar_select %p51, %s52, %s53
      %p57 = pneg %p51
      %p58 = scmp.eq.s32.totalorder %s21, 1
      %p59 = por %p57, %p58
      %p60 = scmp.ne.s32.totalorder %s52, %s55
      %p61 = scmp.eq.s32.totalorder %s21, 0
      %p62 = por %p60, %p61
      %p63 = scmp.ne.s32.totalorder %s52, %s55
      %p64 = scmp.eq.s32.totalorder %s26, 1
      %p65 = por %p63, %p64
      %p66 = scmp.ne.s32.totalorder %s55, %s56
      %p67 = scmp.eq.s32.totalorder %s26, 0
      %p68 = por %p66, %p67
      %p69 = scmp.ne.s32.totalorder %s55, %s56
      %p70 = scmp.eq.s32.totalorder %s27, 1
      %p71 = por %p69, %p70
      %p73 = scmp.ne.s32.totalorder %s56, %s72
      %p74 = scmp.eq.s32.totalorder %s27, 0
      %p75 = por %p73, %p74
      %s76 = ssub.s32 1, %s21
      %s77 = ssub.s32 1, %s28
      %s78 = ssub.s32 %s76, %s77
      %p79 = scmp.eq.s32.totalorder %s78, 0
      %s81 = sadd.s32 %s80, 1
      %s82 = scalar_select %p79, %s80, %s81
      %p85 = pneg %p79
      %p86 = scmp.eq.s32.totalorder %s21, 1
      %p87 = por %p85, %p86
      %p88 = scmp.ne.s32.totalorder %s80, %s83
      %p89 = scmp.eq.s32.totalorder %s21, 0
      %p90 = por %p88, %p89
      %p91 = scmp.ne.s32.totalorder %s80, %s83
      %p92 = scmp.eq.s32.totalorder %s26, 1
      %p93 = por %p91, %p92
      %p94 = scmp.ne.s32.totalorder %s83, %s84
      %p95 = scmp.eq.s32.totalorder %s26, 0
      %p96 = por %p94, %p95
      %p97 = scmp.ne.s32.totalorder %s83, %s84
      %p98 = scmp.eq.s32.totalorder %s27, 1
      %p99 = por %p97, %p98
      %p101 = scmp.ne.s32.totalorder %s84, %s100
      %p102 = scmp.eq.s32.totalorder %s27, 0
      %p103 = por %p101, %p102
      %s105 = sadd.s32 %s104, 1
      %p108 = scmp.eq.s32.totalorder %s21, 1
      %p109 = scmp.ne.s32.totalorder %s104, %s106
      %p110 = scmp.eq.s32.totalorder %s21, 0
      %p111 = por %p109, %p110
      %p112 = scmp.ne.s32.totalorder %s104, %s106
      %p113 = scmp.eq.s32.totalorder %s26, 1
      %p114 = por %p112, %p113
      %p115 = scmp.ne.s32.totalorder %s106, %s107
      %p116 = scmp.eq.s32.totalorder %s26, 0
      %p117 = por %p115, %p116
      %p118 = scmp.ne.s32.totalorder %s106, %s107
      %p119 = scmp.eq.s32.totalorder %s27, 1
      %p120 = por %p118, %p119
      %p122 = scmp.ne.s32.totalorder %s107, %s121
      %p123 = scmp.eq.s32.totalorder %s27, 0
      %p124 = por %p122, %p123
      %s126 = sadd.s32 %s125, 1
      %p129 = scmp.eq.s32.totalorder %s21, 1
      %p130 = scmp.ne.s32.totalorder %s125, %s127
      %p131 = scmp.eq.s32.totalorder %s21, 0
      %p132 = por %p130, %p131
      %p133 = scmp.ne.s32.totalorder %s125, %s127
      %p134 = scmp.eq.s32.totalorder %s26, 1
      %p135 = por %p133, %p134
      %p136 = scmp.ne.s32.totalorder %s127, %s128
      %p137 = scmp.eq.s32.totalorder %s26, 0
      %p138 = por %p136, %p137
      %p139 = scmp.ne.s32.totalorder %s127, %s128
      %p140 = scmp.eq.s32.totalorder %s27, 1
      %p141 = por %p139, %p140
      %p143 = scmp.ne.s32.totalorder %s128, %s142
      %p144 = scmp.eq.s32.totalorder %s27, 0
      %p145 = por %p143, %p144
      %s146 = ssub.s32 %s21, %s28
      %p147 = scmp.eq.s32.totalorder %s146, 0
      %s149 = sadd.s32 %s148, 1
      %s150 = scalar_select %p147, %s148, %s149
      %p153 = pneg %p147
      %p154 = scmp.eq.s32.totalorder %s21, 1
      %p155 = por %p153, %p154
      %p156 = scmp.ne.s32.totalorder %s148, %s151
      %p157 = scmp.eq.s32.totalorder %s21, 0
      %p158 = por %p156, %p157
      %p159 = scmp.ne.s32.totalorder %s148, %s151
      %p160 = scmp.eq.s32.totalorder %s26, 1
      %p161 = por %p159, %p160
      %p162 = scmp.ne.s32.totalorder %s151, %s152
      %p163 = scmp.eq.s32.totalorder %s26, 0
      %p164 = por %p162, %p163
      %p165 = scmp.ne.s32.totalorder %s151, %s152
      %p166 = scmp.eq.s32.totalorder %s27, 1
      %p167 = por %p165, %p166
      %p169 = scmp.ne.s32.totalorder %s152, %s168
      %p170 = scmp.eq.s32.totalorder %s27, 0
      %p171 = por %p169, %p170
      %s172 = ssub.s32 1, %s21
      %s173 = ssub.s32 1, %s28
      %s174 = ssub.s32 %s172, %s173
      %p175 = scmp.eq.s32.totalorder %s174, 0
      %s177 = sadd.s32 %s176, 1
      %s178 = scalar_select %p175, %s176, %s177
      %p181 = pneg %p175
      %p182 = scmp.eq.s32.totalorder %s21, 1
      %p183 = por %p181, %p182
      %p184 = scmp.ne.s32.totalorder %s176, %s179
      %p185 = scmp.eq.s32.totalorder %s21, 0
      %p186 = por %p184, %p185
      %p187 = scmp.ne.s32.totalorder %s176, %s179
      %p188 = scmp.eq.s32.totalorder %s26, 1
      %p189 = por %p187, %p188
      %p190 = scmp.ne.s32.totalorder %s179, %s180
      %p191 = scmp.eq.s32.totalorder %s26, 0
      %p192 = por %p190, %p191
      %p193 = scmp.ne.s32.totalorder %s179, %s180
      %p194 = scmp.eq.s32.totalorder %s27, 1
      %p195 = por %p193, %p194
      %p197 = scmp.ne.s32.totalorder %s180, %s196
      %p198 = scmp.eq.s32.totalorder %s27, 0
      %p199 = por %p197, %p198
      %s201 = sadd.s32 %s200, 1
      %p204 = scmp.eq.s32.totalorder %s21, 1
      %p205 = scmp.ne.s32.totalorder %s200, %s202
      %p206 = scmp.eq.s32.totalorder %s21, 0
      %p207 = por %p205, %p206
      %p208 = scmp.ne.s32.totalorder %s200, %s202
      %p209 = scmp.eq.s32.totalorder %s26, 1
      %p210 = por %p208, %p209
      %p211 = scmp.ne.s32.totalorder %s202, %s203
      %p212 = scmp.eq.s32.totalorder %s26, 0
      %p213 = por %p211, %p212
      %p214 = scmp.ne.s32.totalorder %s202, %s203
      %p215 = scmp.eq.s32.totalorder %s27, 1
      %p216 = por %p214, %p215
      %p218 = scmp.ne.s32.totalorder %s203, %s217
      %p219 = scmp.eq.s32.totalorder %s27, 0
      %p220 = por %p218, %p219
      %s222 = sadd.s32 %s221, 1
      %p225 = scmp.eq.s32.totalorder %s21, 1
      %p226 = scmp.ne.s32.totalorder %s221, %s223
      %p227 = scmp.eq.s32.totalorder %s21, 0
      %p228 = por %p226, %p227
      %p229 = scmp.ne.s32.totalorder %s221, %s223
      %p230 = scmp.eq.s32.totalorder %s26, 1
      %p231 = por %p229, %p230
      %p232 = scmp.ne.s32.totalorder %s223, %s224
      %p233 = scmp.eq.s32.totalorder %s26, 0
      %p234 = por %p232, %p233
      %p235 = scmp.ne.s32.totalorder %s223, %s224
      %p236 = scmp.eq.s32.totalorder %s27, 1
      %p237 = por %p235, %p236
      %p239 = scmp.ne.s32.totalorder %s224, %s238
      %p240 = scmp.eq.s32.totalorder %s27, 0
      %p241 = por %p239, %p240
      %p242 = scmp.le.s32.totalorder 1, %s21
      %p243 = scmp.lt.s32.totalorder %s21, 3
      %p244 = pnand %p242, %p243
      %p245 = pneg %p244
      // Predicated region
      $region9: #{vlstm_forward.3} parent=5 // pred_check
        _
      $region10: #{vlstm_forward.3} parent=5 // pred_check_branch
        %247 = sbr.rel (%p244) target = $region12
      $region11: #{vlstm_forward.3} parent=5 // pred_region
        %s248 = ssub.s32 %s21, 1
        // Predicated region
        $region13: #{vlstm_forward.3} parent=11 // pred_check
          %p249 = pneg %p42
        $region14: #{vlstm_forward.3} parent=11 // pred_check_branch
          %251 = sbr.rel (%p249) target = $region16
        $region15: #{vlstm_forward.3} parent=11 // pred_region
          _
        $region16: #{vlstm_forward.3} parent=11 // pred_fallthru
          _
        // Predicated region
        $region17: #{vlstm_forward.3} parent=11 // pred_check
          %p252 = pneg %p117
        $region18: #{vlstm_forward.3} parent=11 // pred_check_branch
          %254 = sbr.rel (%p252) target = $region20
        $region19: #{vlstm_forward.3} parent=11 // pred_region
          _
        $region20: #{vlstm_forward.3} parent=11 // pred_fallthru
          _
        // Predicated region
        $region21: #{vlstm_forward.3} parent=11 // pred_check
          %p255 = pneg %p138
        $region22: #{vlstm_forward.3} parent=11 // pred_check_branch
          %257 = sbr.rel (%p255) target = $region24
        $region23: #{vlstm_forward.3} parent=11 // pred_region
          _
        $region24: #{vlstm_forward.3} parent=11 // pred_fallthru
          _
      $region12: #{vlstm_forward.3} parent=5 // pred_fallthru
        _
      %p258 = scmp.lt.s32.totalorder %s21, 2
      // Predicated region
      $region25: #{vlstm_forward.3} parent=5 // pred_check
        %p259 = pneg %p258
      $region26: #{vlstm_forward.3} parent=5 // pred_check_branch
        %261 = sbr.rel (%p259) target = $region28
      $region27: #{vlstm_forward.3} parent=5 // pred_region
        // Predicated region
        $region29: #{vlstm_forward.3} parent=27 // pred_check
          %p262 = pneg %p62
        $region30: #{vlstm_forward.3} parent=27 // pred_check_branch
          %264 = sbr.rel (%p262) target = $region32
        $region31: #{vlstm_forward.3} parent=27 // pred_region
          %s265 = smul.u32 8, %s21
          %p266 = scmp.lt.s32.totalorder %s265, 15
          %s267 = scalar_select %p266, %s265, 15
          %s268 = smul.addr %s267, 8
          %s269 = scalar_lea.vmem %s1, %s268
          %s270 = smul.u32 8, %s21
        $region32: #{vlstm_forward.3} parent=27 // pred_fallthru
          _
        // Predicated region
        $region33: #{vlstm_forward.3} parent=27 // pred_check
          %p271 = pneg %p90
        $region34: #{vlstm_forward.3} parent=27 // pred_check_branch
          %273 = sbr.rel (%p271) target = $region36
        $region35: #{vlstm_forward.3} parent=27 // pred_region
          %s274 = ssub.s32 1, %s21
          %s275 = smul.u32 8, %s274
          %p276 = scmp.lt.s32.totalorder %s275, 15
          %s277 = scalar_select %p276, %s275, 15
          %s278 = smul.addr %s277, 8
          %s279 = scalar_lea.vmem %s2, %s278
          %s280 = ssub.s32 1, %s21
          %s281 = smul.u32 8, %s280
        $region36: #{vlstm_forward.3} parent=27 // pred_fallthru
          _
      $region28: #{vlstm_forward.3} parent=5 // pred_fallthru
        _
      %p282 = scmp.le.s32.totalorder 1, %s21
      %p283 = scmp.lt.s32.totalorder %s21, 3
      %p284 = pnand %p282, %p283
      %p285 = pneg %p284
      // Predicated region
      $region37: #{vlstm_forward.3} parent=5 // pred_check
        _
      $region38: #{vlstm_forward.3} parent=5 // pred_check_branch
        %287 = sbr.rel (%p284) target = $region40
      $region39: #{vlstm_forward.3} parent=5 // pred_region
        %s288 = ssub.s32 %s21, 1
        %p289 = pneg %p42
        %p290 = pneg %p39
        %s291 = smul.u32 8, %s26
        %p292 = scmp.lt.s32.totalorder %s291, 15
        %s293 = scalar_select %p292, %s291, 15
        %s294 = smul.addr %s293, 8
        %s295 = scalar_lea.vmem %s1, %s294
        %p296 = pneg %p68
        %p297 = pneg %p65
        %s298 = ssub.s32 1, %s26
        %s299 = smul.u32 8, %s298
        %p300 = scmp.lt.s32.totalorder %s299, 15
        %s301 = scalar_select %p300, %s299, 15
        %s302 = smul.addr %s301, 8
        %s303 = scalar_lea.vmem %s2, %s302
        %p304 = pneg %p96
        %p305 = pneg %p93
        %p306 = pneg %p117
        %p307 = pneg %p114
        %p308 = pneg %p138
        %p309 = pneg %p135
        %p310 = pneg %p164
        %p311 = pneg %p161
        %s312 = sand.u32 %s151, 1
        %s313 = scalar_lea.sflag [#allocation7], %s312
        %s314 = sand.u32 %s151, 1
        %s315 = smul.addr %s314, 64
        %s316 = scalar_lea.vmem [#allocation6], %s315
        %p317 = pneg %p192
        %p318 = pneg %p189
        %s319 = sand.u32 %s179, 1
        %s320 = scalar_lea.sflag [#allocation9], %s319
        %s321 = sand.u32 %s179, 1
        %s322 = smul.addr %s321, 64
        %s323 = scalar_lea.vmem [#allocation8], %s322
        %p324 = pneg %p213
        %p325 = pneg %p210
        %p326 = pneg %p234
        %p327 = pneg %p231
        %s328 = smul.u32 8, %s26
        %p329 = scmp.lt.s32.totalorder %s328, 15
        %s330 = scalar_select %p329, %s328, 15
        %s331 = smul.addr %s330, 8
        %s332 = scalar_lea.vmem %s1, %s331
        %s333 = smul.u32 8, %s26
        %s334 = ssub.s32 1, %s26
        %s335 = smul.u32 8, %s334
        %p336 = scmp.lt.s32.totalorder %s335, 15
        %s337 = scalar_select %p336, %s335, 15
        %s338 = smul.addr %s337, 8
        %s339 = scalar_lea.vmem %s2, %s338
        %s340 = ssub.s32 1, %s26
        %s341 = smul.u32 8, %s340
        %s342 = smul.u32 8, %s26
        %s343 = ssub.s32 1, %s26
        %s344 = smul.u32 8, %s343
        %p346 = scmp.eq.s32.totalorder %s26, 0
        // Predicated region
        $region41: #{vlstm_forward.3} parent=39 // pred_check
          %p347 = pneg %p346
        $region42: #{vlstm_forward.3} parent=39 // pred_check_branch
          %349 = sbr.rel (%p347) target = $region44
        $region43: #{vlstm_forward.3} parent=39 // pred_region
          %vm350 = vcmask 261120
          %351 = vst.msk [vmem:[#allocation2] sm:$0xff] %vm350, 0.0
          %352 = vst.msk [vmem:[#allocation3] sm:$0xff] %vm350, 0.0
          %353 = vst.msk [vmem:[#allocation4] sm:$0xff] %vm350, 0.0
          %354 = vst.msk [vmem:[#allocation5] sm:$0xff] %vm350, 0.0
        $region44: #{vlstm_forward.3} parent=39 // pred_fallthru
          _
        %v355 = vld [vmem:[%s0] sm:$0xff]
        %v356 = vld [vmem:[%s3] sm:$0xf]
        %v357 = vld [vmem:[%s3 + $0x4] sm:$0xf]
        %v358 = vld [vmem:[%s3 + $0x8] sm:$0xf]
        %v359 = vld [vmem:[%s3 + $0xc] sm:$0xf]
        %v360 = vld [vmem:[%s4] sm:$0xf]
        %v361 = vld [vmem:[%s4 + $0x4] sm:$0xf]
        %v362 = vld [vmem:[%s4 + $0x8] sm:$0xf]
        %v363 = vld [vmem:[%s4 + $0xc] sm:$0xf]
        %s364 = smul.u32 %s26, 8
        %s365 = ssub.s32 1, %s26
        %s366 = smul.u32 %s365, 8
        %v367 = vld [vmem:[#allocation2] sm:$0xff]
        %v368 = vld [vmem:[#allocation3] sm:$0xff]
        %v369 = vld [vmem:[#allocation4] sm:$0xff]
        %v370 = vld [vmem:[#allocation5] sm:$0xff]
        loop: start=0, step=1, limit=4
        $region45: #{vlstm_forward.3} parent=39 // loop_pre_header
          _
        $region46: #{vlstm_forward.3} parent=39 // loop_header
          %s372 = sphi 0, %s376
          %p373 = scmp.ge.s32.totalorder %s372, 4
          %v377 = vphi %v367, %v688
          %v378 = vphi %v368, %v786
          %v379 = vphi %v369, %v780
          %v380 = vphi %v370, %v790
        $region47: #{vlstm_forward.3} parent=39 // loop_header_branch
          %375 = sbr.rel (%p373) target = $region51
        $region48: #{vlstm_forward.3} parent=39 // loop_body
          %s381 = smul.u32 %s372, 2
          %s382 = smul.u32 %s381, 8
          %s383 = scalar_lea.vmem %s332, %s382
          %v384 = vld [vmem:[%s383] sm:$0xff]
          %v385 = vpack.c.bf16 %v377, %v377
          %v390 = vunpack.c.l.b16 %v356
          %v391 = vunpack.c.l.b16 %v357
          %v392 = vunpack.c.l.b16 %v358
          %v393 = vunpack.c.l.b16 %v359
          %v394 = vpack.c.b16 %v391, %v390
          %v395 = vpack.c.b16 %v393, %v392
          %vm398 = vcmask 261120
          %v400 = vsel %vm398, %v385, 0
          %402 = vmatprep.subr.bf16.mxu0 0
          %403 = vmatpush1.bf16.msra.mxu0 0
          %404 = vmatprep.subr.bf16.mxu0 0
          %405 = vmatpush1.bf16.msra.mxu0 0
          %406 = vmatprep.subr.bf16.mxu0 0
          %407 = vmatpush1.bf16.msra.mxu0 0
          %408 = vmatprep.subr.bf16.mxu0 0
          %409 = vmatpush1.bf16.msra.mxu0 0
          %410 = vmatprep.subr.bf16.mxu0 0
          %411 = vmatpush1.bf16.msra.mxu0 0
          %412 = vmatprep.subr.bf16.mxu0 0
          %413 = vmatpush1.bf16.msra.mxu0 0
          %414 = vmatprep.subr.bf16.mxu0 0
          %415 = vmatpush1.bf16.msra.mxu0 %v395
          %416 = vmatprep.subr.bf16.mxu0 0
          %417 = vmatpush1.bf16.msra.mxu0 %v394
          %418 = vmatprep.subr.bf16.mxu0 0
          %419 = vmatpush2.bf16.msra.mxu0 0
          %420 = vmatprep.subr.bf16.mxu0 0
          %421 = vmatpush2.bf16.msra.mxu0 0
          %422 = vmatprep.subr.bf16.mxu0 0
          %423 = vmatpush2.bf16.msra.mxu0 0
          %424 = vmatprep.subr.bf16.mxu0 0
          %425 = vmatpush2.bf16.msra.mxu0 0
          %426 = vmatprep.subr.bf16.mxu0 0
          %427 = vmatpush2.bf16.msra.mxu0 0
          %428 = vmatprep.subr.bf16.mxu0 0
          %429 = vmatpush2.bf16.msra.mxu0 0
          %430 = vmatprep.subr.bf16.mxu0 0
          %431 = vmatpush2.bf16.msra.mxu0 0
          %432 = vmatprep.subr.bf16.mxu0 0
          %433 = vmatpush2.bf16.msra.mxu0 0
          %434 = vmatprep.mubr.bf16.mxu0 0
          %435 = vmatmul.mubr.bf16.gmra.mxu0 %v400
          %v436 = vpop.f32.mrf.mxu0
          %v437 = vadd.f32 0.0, %v436
          %v438 = vpop.f32.mrf.mxu0
          %v439 = vpop.f32.mrf.mxu0
          %v440 = vpop.f32.mrf.mxu0
          %441 = vdwg.mxu0
          %v442 = vadd.f32 %v384, %v437
          %v443 = vxor.u32 %v442, 2147483648
          %v444 = vmul.f32 %v443, 1.442695
          %v445 = vpow.pop %v444
          %v446 = vadd.f32 %v445, 1.0
          %v447 = vrcp.pop %v446
          %v448 = vmul.f32 1.0, %v447
          %v449 = vtanh.pop %v442
          %451 = vrot.lane.b32.xlu0 %v378, 32
          %v452 = vpop.permute.xlu0 %451
          %v454 = vmul.f32 %v448, %v452
          %456 = vrot.lane.b32.xlu0 %v449, 64
          %v457 = vpop.permute.xlu0 %456
          %v459 = vmul.f32 %v448, %v457
          %461 = vrot.lane.b32.xlu0 %v459, 32
          %v462 = vpop.permute.xlu0 %461
          %v464 = vadd.f32 %v454, %v462
          %v465 = vtanh.pop %v464
          %467 = vrot.lane.b32.xlu0 %v465, 64
          %v468 = vpop.permute.xlu0 %467
          %v470 = vmul.f32 %v448, %v468
          %s471 = sadd.s32 %s364, %s381
          %v472 = vstv %s471
          %vm473 = vcmp.lt.s32.totalorder %v472, %v355
          %v474 = vsel %vm473, 1, 0
          %475 = vset.pattern.permute.xlu0 0
          %476 = vperm.xlu0 %475, %v474
          %v477 = vpop.permute.xlu0 %476
          %vm478 = vcmp.eq.s32.totalorder %v477, 1
          %480 = vrot.lane.b32.xlu0 %v377, 96
          %v481 = vpop.permute.xlu0 %480
          %v483 = vsel %vm478, %v470, %v481
          %v484 = vsel %vm478, %v464, %v452
          %486 = vrot.lane.b32.xlu0 %v483, 32
          %v487 = vpop.permute.xlu0 %486
          %s489 = scalar_lea.vmem %s316, %s382 [#allocation6]
          %490 = vst.msk [vmem:[%s489] sm:$0xff] %vm398, %v487
          %s491 = ssub.s32 7, %s381
          %s492 = smul.u32 %s491, 8
          %s493 = scalar_lea.vmem %s339, %s492
          %v494 = vld [vmem:[%s493] sm:$0xff]
          %v495 = vpack.c.bf16 %v379, %v379
          %v500 = vunpack.c.l.b16 %v360
          %v501 = vunpack.c.l.b16 %v361
          %v502 = vunpack.c.l.b16 %v362
          %v503 = vunpack.c.l.b16 %v363
          %v504 = vpack.c.b16 %v501, %v500
          %v505 = vpack.c.b16 %v503, %v502
          %v509 = vsel %vm398, %v495, 0
          %511 = vmatprep.subr.bf16.mxu0 0
          %512 = vmatpush1.bf16.msra.mxu0 0
          %513 = vmatprep.subr.bf16.mxu0 0
          %514 = vmatpush1.bf16.msra.mxu0 0
          %515 = vmatprep.subr.bf16.mxu0 0
          %516 = vmatpush1.bf16.msra.mxu0 0
          %517 = vmatprep.subr.bf16.mxu0 0
          %518 = vmatpush1.bf16.msra.mxu0 0
          %519 = vmatprep.subr.bf16.mxu0 0
          %520 = vmatpush1.bf16.msra.mxu0 0
          %521 = vmatprep.subr.bf16.mxu0 0
          %522 = vmatpush1.bf16.msra.mxu0 0
          %523 = vmatprep.subr.bf16.mxu0 0
          %524 = vmatpush1.bf16.msra.mxu0 %v505
          %525 = vmatprep.subr.bf16.mxu0 0
          %526 = vmatpush1.bf16.msra.mxu0 %v504
          %527 = vmatprep.subr.bf16.mxu0 0
          %528 = vmatpush2.bf16.msra.mxu0 0
          %529 = vmatprep.subr.bf16.mxu0 0
          %530 = vmatpush2.bf16.msra.mxu0 0
          %531 = vmatprep.subr.bf16.mxu0 0
          %532 = vmatpush2.bf16.msra.mxu0 0
          %533 = vmatprep.subr.bf16.mxu0 0
          %534 = vmatpush2.bf16.msra.mxu0 0
          %535 = vmatprep.subr.bf16.mxu0 0
          %536 = vmatpush2.bf16.msra.mxu0 0
          %537 = vmatprep.subr.bf16.mxu0 0
          %538 = vmatpush2.bf16.msra.mxu0 0
          %539 = vmatprep.subr.bf16.mxu0 0
          %540 = vmatpush2.bf16.msra.mxu0 0
          %541 = vmatprep.subr.bf16.mxu0 0
          %542 = vmatpush2.bf16.msra.mxu0 0
          %543 = vmatprep.mubr.bf16.mxu0 0
          %544 = vmatmul.mubr.bf16.gmra.mxu0 %v509
          %v545 = vpop.f32.mrf.mxu0
          %v546 = vadd.f32 0.0, %v545
          %v547 = vpop.f32.mrf.mxu0
          %v548 = vpop.f32.mrf.mxu0
          %v549 = vpop.f32.mrf.mxu0
          %550 = vdwg.mxu0
          %v551 = vadd.f32 %v494, %v546
          %v552 = vxor.u32 %v551, 2147483648
          %v553 = vmul.f32 %v552, 1.442695
          %v554 = vpow.pop %v553
          %v555 = vadd.f32 %v554, 1.0
          %v556 = vrcp.pop %v555
          %v557 = vmul.f32 1.0, %v556
          %v558 = vtanh.pop %v551
          %560 = vrot.lane.b32.xlu0 %v380, 32
          %v561 = vpop.permute.xlu0 %560
          %v563 = vmul.f32 %v557, %v561
          %565 = vrot.lane.b32.xlu0 %v558, 64
          %v566 = vpop.permute.xlu0 %565
          %v568 = vmul.f32 %v557, %v566
          %570 = vrot.lane.b32.xlu0 %v568, 32
          %v571 = vpop.permute.xlu0 %570
          %v573 = vadd.f32 %v563, %v571
          %v574 = vtanh.pop %v573
          %576 = vrot.lane.b32.xlu0 %v574, 64
          %v577 = vpop.permute.xlu0 %576
          %v579 = vmul.f32 %v557, %v577
          %s580 = sadd.s32 %s366, %s491
          %v581 = vstv %s580
          %vm582 = vcmp.lt.s32.totalorder %v581, %v355
          %v583 = vsel %vm582, 1, 0
          %584 = vset.pattern.permute.xlu0 0
          %585 = vperm.xlu0 %584, %v583
          %v586 = vpop.permute.xlu0 %585
          %vm587 = vcmp.eq.s32.totalorder %v586, 1
          %589 = vrot.lane.b32.xlu0 %v379, 96
          %v590 = vpop.permute.xlu0 %589
          %v592 = vsel %vm587, %v579, %v590
          %v593 = vsel %vm587, %v573, %v561
          %595 = vrot.lane.b32.xlu0 %v592, 32
          %v596 = vpop.permute.xlu0 %595
          %s598 = scalar_lea.vmem %s323, %s492 [#allocation8]
          %599 = vst.msk [vmem:[%s598] sm:$0xff] %vm398, %v596
          %s600 = sadd.s32 %s381, 1
          %s601 = smul.u32 %s600, 8
          %s602 = scalar_lea.vmem %s332, %s601
          %v603 = vld [vmem:[%s602] sm:$0xff]
          %v604 = vpack.c.bf16 %v483, %v483
          %606 = vrot.lane.b32.xlu0 %v604, 32
          %v607 = vpop.permute.xlu0 %606
          %v609 = vsel %vm398, %v607, 0
          %611 = vmatprep.subr.bf16.mxu0 0
          %612 = vmatpush1.bf16.msra.mxu0 0
          %613 = vmatprep.subr.bf16.mxu0 0
          %614 = vmatpush1.bf16.msra.mxu0 0
          %615 = vmatprep.subr.bf16.mxu0 0
          %616 = vmatpush1.bf16.msra.mxu0 0
          %617 = vmatprep.subr.bf16.mxu0 0
          %618 = vmatpush1.bf16.msra.mxu0 0
          %619 = vmatprep.subr.bf16.mxu0 0
          %620 = vmatpush1.bf16.msra.mxu0 0
          %621 = vmatprep.subr.bf16.mxu0 0
          %622 = vmatpush1.bf16.msra.mxu0 0
          %623 = vmatprep.subr.bf16.mxu0 0
          %624 = vmatpush1.bf16.msra.mxu0 %v395
          %625 = vmatprep.subr.bf16.mxu0 0
          %626 = vmatpush1.bf16.msra.mxu0 %v394
          %627 = vmatprep.subr.bf16.mxu0 0
          %628 = vmatpush2.bf16.msra.mxu0 0
          %629 = vmatprep.subr.bf16.mxu0 0
          %630 = vmatpush2.bf16.msra.mxu0 0
          %631 = vmatprep.subr.bf16.mxu0 0
          %632 = vmatpush2.bf16.msra.mxu0 0
          %633 = vmatprep.subr.bf16.mxu0 0
          %634 = vmatpush2.bf16.msra.mxu0 0
          %635 = vmatprep.subr.bf16.mxu0 0
          %636 = vmatpush2.bf16.msra.mxu0 0
          %637 = vmatprep.subr.bf16.mxu0 0
          %638 = vmatpush2.bf16.msra.mxu0 0
          %639 = vmatprep.subr.bf16.mxu0 0
          %640 = vmatpush2.bf16.msra.mxu0 0
          %641 = vmatprep.subr.bf16.mxu0 0
          %642 = vmatpush2.bf16.msra.mxu0 0
          %643 = vmatprep.mubr.bf16.mxu0 0
          %644 = vmatmul.mubr.bf16.gmra.mxu0 %v609
          %v645 = vpop.f32.mrf.mxu0
          %v646 = vadd.f32 0.0, %v645
          %v647 = vpop.f32.mrf.mxu0
          %v648 = vpop.f32.mrf.mxu0
          %v649 = vpop.f32.mrf.mxu0
          %650 = vdwg.mxu0
          %v651 = vadd.f32 %v603, %v646
          %v652 = vxor.u32 %v651, 2147483648
          %v653 = vmul.f32 %v652, 1.442695
          %v654 = vpow.pop %v653
          %v655 = vadd.f32 %v654, 1.0
          %v656 = vrcp.pop %v655
          %v657 = vmul.f32 1.0, %v656
          %v658 = vtanh.pop %v651
          %v659 = vmul.f32 %v657, %v484
          %661 = vrot.lane.b32.xlu0 %v658, 64
          %v662 = vpop.permute.xlu0 %661
          %v664 = vmul.f32 %v657, %v662
          %666 = vrot.lane.b32.xlu0 %v664, 32
          %v667 = vpop.permute.xlu0 %666
          %v669 = vadd.f32 %v659, %v667
          %v670 = vtanh.pop %v669
          %672 = vrot.lane.b32.xlu0 %v670, 64
          %v673 = vpop.permute.xlu0 %672
          %v675 = vmul.f32 %v657, %v673
          %s676 = sadd.s32 %s364, %s600
          %v677 = vstv %s676
          %vm678 = vcmp.lt.s32.totalorder %v677, %v355
          %v679 = vsel %vm678, 1, 0
          %680 = vset.pattern.permute.xlu0 0
          %681 = vperm.xlu0 %680, %v679
          %v682 = vpop.permute.xlu0 %681
          %vm683 = vcmp.eq.s32.totalorder %v682, 1
          %v684 = vsel %vm683, %v675, %v483
          %v685 = vsel %vm683, %v669, %v484
          %687 = vrot.lane.b32.xlu0 %v684, 32
          %v688 = vpop.permute.xlu0 %687
          %s690 = scalar_lea.vmem %s316, %s601 [#allocation6]
          %691 = vst.msk [vmem:[%s690] sm:$0xff] %vm398, %v688
          %s692 = ssub.s32 6, %s381
          %s693 = smul.u32 %s692, 8
          %s694 = scalar_lea.vmem %s339, %s693
          %v695 = vld [vmem:[%s694] sm:$0xff]
          %v696 = vpack.c.bf16 %v592, %v592
          %698 = vrot.lane.b32.xlu0 %v696, 32
          %v699 = vpop.permute.xlu0 %698
          %v701 = vsel %vm398, %v699, 0
          %703 = vmatprep.subr.bf16.mxu0 0
          %704 = vmatpush1.bf16.msra.mxu0 0
          %705 = vmatprep.subr.bf16.mxu0 0
          %706 = vmatpush1.bf16.msra.mxu0 0
          %707 = vmatprep.subr.bf16.mxu0 0
          %708 = vmatpush1.bf16.msra.mxu0 0
          %709 = vmatprep.subr.bf16.mxu0 0
          %710 = vmatpush1.bf16.msra.mxu0 0
          %711 = vmatprep.subr.bf16.mxu0 0
          %712 = vmatpush1.bf16.msra.mxu0 0
          %713 = vmatprep.subr.bf16.mxu0 0
          %714 = vmatpush1.bf16.msra.mxu0 0
          %715 = vmatprep.subr.bf16.mxu0 0
          %716 = vmatpush1.bf16.msra.mxu0 %v505
          %717 = vmatprep.subr.bf16.mxu0 0
          %718 = vmatpush1.bf16.msra.mxu0 %v504
          %719 = vmatprep.subr.bf16.mxu0 0
          %720 = vmatpush2.bf16.msra.mxu0 0
          %721 = vmatprep.subr.bf16.mxu0 0
          %722 = vmatpush2.bf16.msra.mxu0 0
          %723 = vmatprep.subr.bf16.mxu0 0
          %724 = vmatpush2.bf16.msra.mxu0 0
          %725 = vmatprep.subr.bf16.mxu0 0
          %726 = vmatpush2.bf16.msra.mxu0 0
          %727 = vmatprep.subr.bf16.mxu0 0
          %728 = vmatpush2.bf16.msra.mxu0 0
          %729 = vmatprep.subr.bf16.mxu0 0
          %730 = vmatpush2.bf16.msra.mxu0 0
          %731 = vmatprep.subr.bf16.mxu0 0
          %732 = vmatpush2.bf16.msra.mxu0 0
          %733 = vmatprep.subr.bf16.mxu0 0
          %734 = vmatpush2.bf16.msra.mxu0 0
          %735 = vmatprep.mubr.bf16.mxu0 0
          %736 = vmatmul.mubr.bf16.gmra.mxu0 %v701
          %v737 = vpop.f32.mrf.mxu0
          %v738 = vadd.f32 0.0, %v737
          %v739 = vpop.f32.mrf.mxu0
          %v740 = vpop.f32.mrf.mxu0
          %v741 = vpop.f32.mrf.mxu0
          %742 = vdwg.mxu0
          %v743 = vadd.f32 %v695, %v738
          %v744 = vxor.u32 %v743, 2147483648
          %v745 = vmul.f32 %v744, 1.442695
          %v746 = vpow.pop %v745
          %v747 = vadd.f32 %v746, 1.0
          %v748 = vrcp.pop %v747
          %v749 = vmul.f32 1.0, %v748
          %v750 = vtanh.pop %v743
          %v751 = vmul.f32 %v749, %v593
          %753 = vrot.lane.b32.xlu0 %v750, 64
          %v754 = vpop.permute.xlu0 %753
          %v756 = vmul.f32 %v749, %v754
          %758 = vrot.lane.b32.xlu0 %v756, 32
          %v759 = vpop.permute.xlu0 %758
          %v761 = vadd.f32 %v751, %v759
          %v762 = vtanh.pop %v761
          %764 = vrot.lane.b32.xlu0 %v762, 64
          %v765 = vpop.permute.xlu0 %764
          %v767 = vmul.f32 %v749, %v765
          %s768 = sadd.s32 %s366, %s692
          %v769 = vstv %s768
          %vm770 = vcmp.lt.s32.totalorder %v769, %v355
          %v771 = vsel %vm770, 1, 0
          %772 = vset.pattern.permute.xlu0 0
          %773 = vperm.xlu0 %772, %v771
          %v774 = vpop.permute.xlu0 %773
          %vm775 = vcmp.eq.s32.totalorder %v774, 1
          %v776 = vsel %vm775, %v767, %v592
          %v777 = vsel %vm775, %v761, %v593
          %779 = vrot.lane.b32.xlu0 %v776, 32
          %v780 = vpop.permute.xlu0 %779
          %s782 = scalar_lea.vmem %s323, %s693 [#allocation8]
          %783 = vst.msk [vmem:[%s782] sm:$0xff] %vm398, %v780
          %785 = vrot.lane.b32.xlu0 %v685, 96
          %v786 = vpop.permute.xlu0 %785
          %789 = vrot.lane.b32.xlu0 %v777, 96
          %v790 = vpop.permute.xlu0 %789
        $region49: #{vlstm_forward.3} parent=39 // loop_footer
          %s376 = sadd.s32 1, %s372
        $region50: #{vlstm_forward.3} parent=39 // loop_footer_branch
          %371 = sbr.rel target = $region46
        $region51: #{vlstm_forward.3} parent=39 // loop_exit
          _
        %vm792 = vcmask 261120
        %793 = vst.msk [vmem:[#allocation2] sm:$0xff] %vm792, %v377
        %794 = vst.msk [vmem:[#allocation3] sm:$0xff] %vm792, %v378
        %795 = vst.msk [vmem:[#allocation4] sm:$0xff] %vm792, %v379
        %796 = vst.msk [vmem:[#allocation5] sm:$0xff] %vm792, %v380
        %797 = vst.msk [vmem:[%s7] sm:$0xff] %vm792, %v377
        %798 = vst.msk [vmem:[%s8] sm:$0xff] %vm792, %v379
        %s799 = sand.u32 %s151, 1
        %s800 = scalar_lea.sflag [#allocation7], %s799
        %s801 = sand.u32 %s151, 1
        %s802 = smul.addr %s801, 64
        %s803 = scalar_lea.vmem [#allocation6], %s802
        %s804 = sand.u32 %s179, 1
        %s805 = scalar_lea.sflag [#allocation9], %s804
        %s806 = sand.u32 %s179, 1
        %s807 = smul.addr %s806, 64
        %s808 = scalar_lea.vmem [#allocation8], %s807
        // Predicated region
        $region52: #{vlstm_forward.3} parent=39 // pred_check
          %p809 = pneg %p161
        $region53: #{vlstm_forward.3} parent=39 // pred_check_branch
          %811 = sbr.rel (%p809) target = $region55
        $region54: #{vlstm_forward.3} parent=39 // pred_region
          %s812 = smul.u32 8, %s26
          %s814 = ssub.s32 1024, 1024
          %815 = vsyncadd %s800, %s814
          %s816 = smul.addr %s812, 128
          %s817 = scalar_lea.hbm %s5, %s816
          %s818 = sshll.u32 %s803, 4
          %s819 = int_to_ptr.vmem [resolvable:$true] %s818
          %824 = dma.vmem_to_hbm [thread:$0]  %s819, 1024, %s817, %s800, 128, 128, 8
        $region55: #{vlstm_forward.3} parent=39 // pred_fallthru
          _
        // Predicated region
        $region56: #{vlstm_forward.3} parent=39 // pred_check
          %p825 = pneg %p189
        $region57: #{vlstm_forward.3} parent=39 // pred_check_branch
          %827 = sbr.rel (%p825) target = $region59
        $region58: #{vlstm_forward.3} parent=39 // pred_region
          %s828 = ssub.s32 1, %s26
          %s829 = smul.u32 8, %s828
          %s831 = ssub.s32 1024, 1024
          %832 = vsyncadd %s805, %s831
          %s833 = smul.addr %s829, 128
          %s834 = scalar_lea.hbm %s6, %s833
          %s835 = sshll.u32 %s808, 4
          %s836 = int_to_ptr.vmem [resolvable:$true] %s835
          %841 = dma.vmem_to_hbm [thread:$0]  %s836, 1024, %s834, %s805, 128, 128, 8
        $region59: #{vlstm_forward.3} parent=39 // pred_fallthru
          _
        // Predicated region
        $region60: #{vlstm_forward.3} parent=39 // pred_check
          %p842 = pneg %p210
        $region61: #{vlstm_forward.3} parent=39 // pred_check_branch
          %844 = sbr.rel (%p842) target = $region63
        $region62: #{vlstm_forward.3} parent=39 // pred_region
          _
        $region63: #{vlstm_forward.3} parent=39 // pred_fallthru
          _
        // Predicated region
        $region64: #{vlstm_forward.3} parent=39 // pred_check
          %p845 = pneg %p231
        $region65: #{vlstm_forward.3} parent=39 // pred_check_branch
          %847 = sbr.rel (%p845) target = $region67
        $region66: #{vlstm_forward.3} parent=39 // pred_region
          _
        $region67: #{vlstm_forward.3} parent=39 // pred_fallthru
          _
        // Predicated region
        $region68: #{vlstm_forward.3} parent=39 // pred_check
          %p848 = pneg %p210
        $region69: #{vlstm_forward.3} parent=39 // pred_check_branch
          %850 = sbr.rel (%p848) target = $region71
        $region70: #{vlstm_forward.3} parent=39 // pred_region
          _
        $region71: #{vlstm_forward.3} parent=39 // pred_fallthru
          _
        // Predicated region
        $region72: #{vlstm_forward.3} parent=39 // pred_check
          %p851 = pneg %p231
        $region73: #{vlstm_forward.3} parent=39 // pred_check_branch
          %853 = sbr.rel (%p851) target = $region75
        $region74: #{vlstm_forward.3} parent=39 // pred_region
          _
        $region75: #{vlstm_forward.3} parent=39 // pred_fallthru
          _
      $region40: #{vlstm_forward.3} parent=5 // pred_fallthru
        _
      %p854 = scmp.le.s32.totalorder 2, %s21
      // Predicated region
      $region76: #{vlstm_forward.3} parent=5 // pred_check
        %p855 = pneg %p854
      $region77: #{vlstm_forward.3} parent=5 // pred_check_branch
        %857 = sbr.rel (%p855) target = $region79
      $region78: #{vlstm_forward.3} parent=5 // pred_region
        %s858 = ssub.s32 %s21, 2
        // Predicated region
        $region80: #{vlstm_forward.3} parent=78 // pred_check
          %p859 = pneg %p167
        $region81: #{vlstm_forward.3} parent=78 // pred_check_branch
          %861 = sbr.rel (%p859) target = $region83
        $region82: #{vlstm_forward.3} parent=78 // pred_region
          %s862 = sand.u32 %s152, 1
          %s863 = scalar_lea.sflag [#allocation7], %s862
          %s864 = sand.u32 %s152, 1
          %s865 = smul.addr %s864, 64
          %s866 = scalar_lea.vmem [#allocation6], %s865
          %867 = dma.done %s863, 1024
        $region83: #{vlstm_forward.3} parent=78 // pred_fallthru
          _
        // Predicated region
        $region84: #{vlstm_forward.3} parent=78 // pred_check
          %p868 = pneg %p195
        $region85: #{vlstm_forward.3} parent=78 // pred_check_branch
          %870 = sbr.rel (%p868) target = $region87
        $region86: #{vlstm_forward.3} parent=78 // pred_region
          %s871 = sand.u32 %s180, 1
          %s872 = scalar_lea.sflag [#allocation9], %s871
          %s873 = sand.u32 %s180, 1
          %s874 = smul.addr %s873, 64
          %s875 = scalar_lea.vmem [#allocation8], %s874
          %876 = dma.done %s872, 1024
        $region87: #{vlstm_forward.3} parent=78 // pred_fallthru
          _
      $region79: #{vlstm_forward.3} parent=5 // pred_fallthru
        _
    $region6: #{vlstm_forward.3} parent=1 // loop_footer
      %s25 = sadd.s32 1, %s21
    $region7: #{vlstm_forward.3} parent=1 // loop_footer_branch
      %20 = sbr.rel target = $region3
    $region8: #{vlstm_forward.3} parent=1 // loop_exit
      _
    %877 = vsyncpa [#allocation7], 1
    %s878 = scalar_lea.sflag [#allocation7], 1
    %879 = vsyncpa %s878, 1
    %880 = vsyncpa [#allocation9], 1
    %s881 = scalar_lea.sflag [#allocation9], 1
    %882 = vsyncpa %s881, 1

</llo_original>
